<compile_context>
chip_gen: v5e
topology: v5e:2x2
jax: 0.10.0
libtpu: 0.0.40
codegen_flags: <defaults>
</compile_context>

<pallas_src>
import functools

import jax
import jax.numpy as jnp
from jax import lax
from jax.experimental import pallas as pl
from jax.experimental.pallas import tpu as pltpu


def _round_up(n: int, m: int) -> int:
    return ((n + m - 1) // m) * m


def _pad2(a, rows: int, cols: int):
    return jnp.pad(a, ((0, rows - a.shape[0]), (0, cols - a.shape[1])))


def vae_kernel(x_ref,
               w1_ref, b1_ref,
               w23_ref, b23_ref,
               dw1_ref, db1_ref,
               dw2_ref, db2_ref,
               out_ref, kl_ref,
               *, latent_dim, latent_pad, true_batch, tile_b):
    i = pl.program_id(0)

    x = x_ref[...]                                           # (TB, Din_p) bf16

    # ---- Encoder ----
    h = jnp.dot(x, w1_ref[...], preferred_element_type=jnp.float32) + b1_ref[...]
    h = jnp.maximum(h, 0.0)                                  # f32

    # Fused [mu | log_sigma] projection: one MXU pass instead of two.
    y = jnp.dot(h.astype(jnp.bfloat16), w23_ref[...],
                preferred_element_type=jnp.float32) + b23_ref[...]   # (TB, 2*L_p) f32

    # ---- KL divergence: sum(sigma^2 + mu^2 - log(sigma) - 0.5), per-tile partial
    col = lax.broadcasted_iota(jnp.int32, y.shape, 1)
    row = lax.broadcasted_iota(jnp.int32, y.shape, 0) + i * tile_b
    valid_row = row < true_batch                      # mask batch-padding rows
    is_mu = col < latent_dim                          # true mu columns
    is_ls = (col >= latent_pad) & (col < latent_pad + latent_dim)  # true log_sigma cols
    kl_elem = jnp.where(valid_row & is_mu, y * y,
                        jnp.where(valid_row & is_ls,
                                  jnp.exp(2.0 * y) - y,    # sigma^2 - log(sigma)
                                  0.0))
    n_valid = jnp.minimum(tile_b, true_batch - i * tile_b).astype(jnp.float32)
    kl_tile = jnp.sum(kl_elem) - 0.5 * latent_dim * n_valid
    # Lane-dense scalar emission: broadcast the per-tile scalar into one (8,128)
    # tile so the store is a full-width unmasked vst; wrapper reduces the partials.
    kl_ref[...] = jnp.full(kl_ref.shape, kl_tile, dtype=jnp.float32)

    # ---- Decoder (z = mu; the log_sigma rows of dw1 are zero, so the fused y
    # can be fed straight into the matmul without slicing) ----
    dh = jnp.dot(y.astype(jnp.bfloat16), dw1_ref[...],
                 preferred_element_type=jnp.float32) + db1_ref[...]
    dh = jnp.maximum(dh, 0.0)
    logits = jnp.dot(dh.astype(jnp.bfloat16), dw2_ref[...],
                     preferred_element_type=jnp.float32) + db2_ref[...]
    out_ref[...] = jax.nn.sigmoid(logits)


def vae_forward(x, params, *, tile_b=128):
    B, d_in = x.shape
    d_hid = params["w1"].shape[1]
    d_lat = params["w2"].shape[1]
    d_dec = params["dw1"].shape[1]
    d_out = params["dw2"].shape[1]

    # Lane/sublane friendly padded sizes (zero padding is exact; KL is masked).
    din_p = _round_up(d_in, 128)
    dhid_p = _round_up(d_hid, 128)
    dlat_p = _round_up(d_lat, 64)        # fused mu|log_sigma width 2*dlat_p is 128-mult
    ddec_p = _round_up(d_dec, 128)
    dout_p = _round_up(d_out, 128)

    tb = min(tile_b, _round_up(B, 8))
    b_p = _round_up(B, tb)
    n_tiles = b_p // tb

    bf16, f32 = jnp.bfloat16, jnp.float32

    # Pad + fuse + cast parameters (MXU operands in bf16, biases stay f32).
    x_p = _pad2(x, b_p, din_p).astype(bf16)
    w1 = _pad2(params["w1"], din_p, dhid_p).astype(bf16)
    b1 = _pad2(params["b1"], 1, dhid_p).astype(f32)
    w23 = jnp.concatenate([_pad2(params["w2"], dhid_p, dlat_p),
                           _pad2(params["w3"], dhid_p, dlat_p)], axis=1).astype(bf16)
    b23 = jnp.concatenate([_pad2(params["b2"], 1, dlat_p),
                           _pad2(params["b3"], 1, dlat_p)], axis=1).astype(f32)
    dw1 = _pad2(params["dw1"], 2 * dlat_p, ddec_p).astype(bf16)  # log_sigma rows zero
    db1 = _pad2(params["db1"], 1, ddec_p).astype(f32)
    dw2 = _pad2(params["dw2"], ddec_p, dout_p).astype(bf16)
    db2 = _pad2(params["db2"], 1, dout_p).astype(f32)

    kernel = functools.partial(vae_kernel, latent_dim=d_lat, latent_pad=dlat_p,
                               true_batch=B, tile_b=tb)

    const = lambda i: (0, 0)
    in_specs = [
        pl.BlockSpec((tb, din_p), lambda i: (i, 0)),   # x streams (double-buffered)
        pl.BlockSpec((din_p, dhid_p), const),          # weights stay VMEM-resident
        pl.BlockSpec((1, dhid_p), const),
        pl.BlockSpec((dhid_p, 2 * dlat_p), const),
        pl.BlockSpec((1, 2 * dlat_p), const),
        pl.BlockSpec((2 * dlat_p, ddec_p), const),
        pl.BlockSpec((1, ddec_p), const),
        pl.BlockSpec((ddec_p, dout_p), const),
        pl.BlockSpec((1, dout_p), const),
    ]
    out_specs = [
        pl.BlockSpec((tb, dout_p), lambda i: (i, 0)),  # lane-dense recon tile
        pl.BlockSpec((8, 128), lambda i: (i, 0)),      # per-tile KL partial (lane-dense)
    ]
    out_shape = (
        jax.ShapeDtypeStruct((b_p, dout_p), f32),
        jax.ShapeDtypeStruct((n_tiles * 8, 128), f32),
    )

    # Scheduler hints + explicit scoped-VMEM limit (capped at 64 MiB for v7x).
    flops = 2 * B * (d_in * d_hid + d_hid * 2 * d_lat + d_lat * d_dec + d_dec * d_out)
    transcendentals = B * (2 * d_lat + d_out)
    bytes_accessed = (x_p.size * 2
                      + (w1.size + w23.size + dw1.size + dw2.size) * 2
                      + (b1.size + b23.size + db1.size + db2.size) * 4
                      + b_p * dout_p * 4 + n_tiles * 8 * 128 * 4)
    weight_bytes = ((w1.size + w23.size + dw1.size + dw2.size) * 2
                    + (b1.size + b23.size + db1.size + db2.size) * 4)
    act_bytes = 2 * (tb * din_p * 2 + tb * dout_p * 4 + 8 * 128 * 4)  # double buffers
    interm_bytes = tb * (dhid_p + 2 * dlat_p + ddec_p + dout_p) * 4
    vmem_limit = int(min(max(2 * (weight_bytes + act_bytes + interm_bytes) + (1 << 20),
                             32 * 1024 * 1024),
                         64 * 1024 * 1024))

    recon_p, kl_parts = pl.pallas_call(
        kernel,
        out_shape=out_shape,
        grid_spec=pltpu.PrefetchScalarGridSpec(
            num_scalar_prefetch=0,
            grid=(n_tiles,),
            in_specs=in_specs,
            out_specs=out_specs,
        ),
        compiler_params=pltpu.CompilerParams(
            dimension_semantics=("parallel",),
            vmem_limit_bytes=vmem_limit,
        ),
        cost_estimate=pl.CostEstimate(
            flops=int(flops),
            transcendentals=int(transcendentals),
            bytes_accessed=int(bytes_accessed)),
    )(x_p, w1, b1, w23, b23, dw1, db1, dw2, db2)

    recon = recon_p[:B, :d_out]
    kl = jnp.sum(kl_parts.reshape(n_tiles, 8, 128)[:, 0, 0])
    return recon, kl


def init_params(key, input_dim, hidden_dim, latent_dim, dec_hidden_dim, output_dim):
    """PyTorch-style uniform(-1/sqrt(fan_in), 1/sqrt(fan_in)) init, deterministic.
    Weights stored as (in_features, out_features)."""
    def linear(k, fan_in, fan_out):
        kw, kb = jax.random.split(k)
        bound = 1.0 / jnp.sqrt(fan_in)
        w = jax.random.uniform(kw, (fan_in, fan_out), jnp.float32, -bound, bound)
        b = jax.random.uniform(kb, (1, fan_out), jnp.float32, -bound, bound)
        return w, b

    keys = jax.random.split(key, 5)
    w1, b1 = linear(keys[0], input_dim, hidden_dim)          # encoder.linear1
    w2, b2 = linear(keys[1], hidden_dim, latent_dim)         # encoder.linear2 (mu)
    w3, b3 = linear(keys[2], hidden_dim, latent_dim)         # encoder.linear3 (log sigma)
    dw1, db1 = linear(keys[3], latent_dim, dec_hidden_dim)   # decoder.linear1
    dw2, db2 = linear(keys[4], dec_hidden_dim, output_dim)   # decoder.linear2
    return dict(w1=w1, b1=b1, w2=w2, b2=b2, w3=w3, b3=b3,
                dw1=dw1, db1=db1, dw2=dw2, db2=db2)


def vae_reference(x, p):
    """Same math as the PyTorch module (inference path), using the same
    bf16-operand / f32-accumulation numerics as the kernel."""
    bf = lambda a: a.astype(jnp.bfloat16)
    dot = lambda a, b: jnp.dot(bf(a), bf(b), preferred_element_type=jnp.float32)
    h = jnp.maximum(dot(x, p["w1"]) + p["b1"], 0.0)
    mu = dot(h, p["w2"]) + p["b2"]
    sigma = jnp.exp(dot(h, p["w3"]) + p["b3"])
    kl = jnp.sum(sigma ** 2 + mu ** 2 - jnp.log(sigma) - 0.5)
    z = mu
    dh = jnp.maximum(dot(z, p["dw1"]) + p["db1"], 0.0)
    recon = jax.nn.sigmoid(dot(dh, p["dw2"]) + p["db2"])
    return recon, kl


if __name__ == "__main__":
    # Small, deliberately "odd" shapes to exercise the padding / masking paths.
    B = 300
    INPUT_DIM = 200
    HIDDEN_DIM = 100
    LATENT_DIM = 20
    DEC_HIDDEN_DIM = 100
    OUTPUT_DIM = 200

    key = jax.random.PRNGKey(0)
    kx, kp = jax.random.split(key)
    x = jax.random.normal(kx, (B, INPUT_DIM), jnp.float32)
    params = init_params(kp, INPUT_DIM, HIDDEN_DIM, LATENT_DIM,
                         DEC_HIDDEN_DIM, OUTPUT_DIM)

    recon, kl = vae_forward(x, params, tile_b=128)
    recon = jax.block_until_ready(recon)
    kl = jax.block_until_ready(kl)

    ref_recon, ref_kl = vae_reference(x, params)
    assert recon.shape == (B, OUTPUT_DIM)
    assert jnp.allclose(recon, ref_recon, atol=2e-4, rtol=1e-3), \
        float(jnp.max(jnp.abs(recon - ref_recon)))
    assert jnp.allclose(kl, ref_kl, rtol=1e-3, atol=1e-1), (float(kl), float(ref_kl))

    print("KERNEL_OK")
</pallas_src>

<mosaic_0001>
module attributes {stable_mosaic.version = 11 : i64} {
  func.func @vae_kernel(%arg0: i32, %arg1: memref<128x256xbf16, #tpu.memory_space<vmem>>, %arg2: memref<256x128xbf16, #tpu.memory_space<vmem>>, %arg3: memref<1x128xf32, #tpu.memory_space<vmem>>, %arg4: memref<128x128xbf16, #tpu.memory_space<vmem>>, %arg5: memref<1x128xf32, #tpu.memory_space<vmem>>, %arg6: memref<128x128xbf16, #tpu.memory_space<vmem>>, %arg7: memref<1x128xf32, #tpu.memory_space<vmem>>, %arg8: memref<128x256xbf16, #tpu.memory_space<vmem>>, %arg9: memref<1x256xf32, #tpu.memory_space<vmem>>, %arg10: memref<128x256xf32, #tpu.memory_space<vmem>>, %arg11: memref<8x128xf32, #tpu.memory_space<vmem>>) attributes {dimension_semantics = [#tpu.dimension_semantics<parallel>], iteration_bounds = array<i64: 3>, scalar_prefetch = 0 : i64, scratch_operands = 0 : i64, tpu.core_type = #tpu.core_type<tc>, window_params = [{transform_indices = @transform_0, window_bounds = array<i64: 128, 256>}, {pipeline_mode = #tpu.pipeline_mode<synchronous>, transform_indices = @transform_1, window_bounds = array<i64: 256, 128>}, {pipeline_mode = #tpu.pipeline_mode<synchronous>, transform_indices = @transform_2, window_bounds = array<i64: 1, 128>}, {pipeline_mode = #tpu.pipeline_mode<synchronous>, transform_indices = @transform_3, window_bounds = array<i64: 128, 128>}, {pipeline_mode = #tpu.pipeline_mode<synchronous>, transform_indices = @transform_4, window_bounds = array<i64: 1, 128>}, {pipeline_mode = #tpu.pipeline_mode<synchronous>, transform_indices = @transform_5, window_bounds = array<i64: 128, 128>}, {pipeline_mode = #tpu.pipeline_mode<synchronous>, transform_indices = @transform_6, window_bounds = array<i64: 1, 128>}, {pipeline_mode = #tpu.pipeline_mode<synchronous>, transform_indices = @transform_7, window_bounds = array<i64: 128, 256>}, {pipeline_mode = #tpu.pipeline_mode<synchronous>, transform_indices = @transform_8, window_bounds = array<i64: 1, 256>}, {transform_indices = @transform_9, window_bounds = array<i64: 128, 256>}, {transform_indices = @transform_10, window_bounds = array<i64: 8, 128>}]} {
    %c0 = arith.constant 0 : index
    %c0_0 = arith.constant 0 : index
    %0 = vector.load %arg1[%c0, %c0_0] : memref<128x256xbf16, #tpu.memory_space<vmem>>, vector<128x256xbf16>
    %c0_1 = arith.constant 0 : index
    %c0_2 = arith.constant 0 : index
    %1 = vector.load %arg2[%c0_1, %c0_2] : memref<256x128xbf16, #tpu.memory_space<vmem>>, vector<256x128xbf16>
    %cst = arith.constant dense<0.000000e+00> : vector<128x128xf32>
    %2 = tpu.matmul %0, %1, %cst {dimension_numbers = #tpu.dot_dimension_numbers<[1], [0], [0], [1], [0, 0, 1, 1], [], []>} : vector<128x256xbf16>, vector<256x128xbf16>, vector<128x128xf32> -> vector<128x128xf32>
    %c0_3 = arith.constant 0 : index
    %c0_4 = arith.constant 0 : index
    %3 = vector.load %arg3[%c0_3, %c0_4] : memref<1x128xf32, #tpu.memory_space<vmem>>, vector<1x128xf32>
    %4 = vector.broadcast %3 : vector<1x128xf32> to vector<128x128xf32>
    %5 = arith.addf %2, %4 : vector<128x128xf32>
    %cst_5 = arith.constant 0.000000e+00 : f32
    %6 = vector.broadcast %cst_5 : f32 to vector<128x128xf32>
    %7 = arith.maximumf %5, %6 : vector<128x128xf32>
    %8 = arith.truncf %7 : vector<128x128xf32> to vector<128x128xbf16>
    %c0_6 = arith.constant 0 : index
    %c0_7 = arith.constant 0 : index
    %9 = vector.load %arg4[%c0_6, %c0_7] : memref<128x128xbf16, #tpu.memory_space<vmem>>, vector<128x128xbf16>
    %cst_8 = arith.constant dense<0.000000e+00> : vector<128x128xf32>
    %10 = tpu.matmul %8, %9, %cst_8 {dimension_numbers = #tpu.dot_dimension_numbers<[1], [0], [0], [1], [0, 0, 1, 1], [], []>} : vector<128x128xbf16>, vector<128x128xbf16>, vector<128x128xf32> -> vector<128x128xf32>
    %c0_9 = arith.constant 0 : index
    %c0_10 = arith.constant 0 : index
    %11 = vector.load %arg5[%c0_9, %c0_10] : memref<1x128xf32, #tpu.memory_space<vmem>>, vector<1x128xf32>
    %12 = vector.broadcast %11 : vector<1x128xf32> to vector<128x128xf32>
    %13 = arith.addf %10, %12 : vector<128x128xf32>
    %14 = tpu.iota {dimensions = array<i32: 1>} : vector<128x128xi32>
    %15 = tpu.iota {dimensions = array<i32: 0>} : vector<128x128xi32>
    %c128_i32 = arith.constant 128 : i32
    %16 = arith.muli %arg0, %c128_i32 : i32
    %17 = vector.broadcast %16 : i32 to vector<128x128xi32>
    %18 = arith.addi %15, %17 : vector<128x128xi32>
    %c300_i32 = arith.constant 300 : i32
    %19 = vector.broadcast %c300_i32 : i32 to vector<128x128xi32>
    %20 = arith.cmpi slt, %18, %19 : vector<128x128xi32>
    %c20_i32 = arith.constant 20 : i32
    %21 = vector.broadcast %c20_i32 : i32 to vector<128x128xi32>
    %22 = arith.cmpi slt, %14, %21 : vector<128x128xi32>
    %c64_i32 = arith.constant 64 : i32
    %23 = vector.broadcast %c64_i32 : i32 to vector<128x128xi32>
    %24 = arith.cmpi sge, %14, %23 : vector<128x128xi32>
    %c84_i32 = arith.constant 84 : i32
    %25 = vector.broadcast %c84_i32 : i32 to vector<128x128xi32>
    %26 = arith.cmpi slt, %14, %25 : vector<128x128xi32>
    %27 = arith.andi %24, %26 : vector<128x128xi1>
    %28 = arith.andi %20, %22 : vector<128x128xi1>
    %29 = arith.mulf %13, %13 : vector<128x128xf32>
    %30 = arith.andi %20, %27 : vector<128x128xi1>
    %cst_11 = arith.constant 2.000000e+00 : f32
    %31 = vector.broadcast %cst_11 : f32 to vector<128x128xf32>
    %32 = arith.mulf %31, %13 : vector<128x128xf32>
    %33 = math.exp %32 : vector<128x128xf32>
    %34 = arith.subf %33, %13 : vector<128x128xf32>
    %cst_12 = arith.constant 0.000000e+00 : f32
    %35 = vector.broadcast %cst_12 : f32 to vector<128x128xf32>
    %36 = arith.select %30, %34, %35 : vector<128x128xi1>, vector<128x128xf32>
    %37 = arith.select %28, %29, %36 : vector<128x128xi1>, vector<128x128xf32>
    %c128_i32_13 = arith.constant 128 : i32
    %38 = arith.muli %arg0, %c128_i32_13 : i32
    %c300_i32_14 = arith.constant 300 : i32
    %39 = arith.subi %c300_i32_14, %38 : i32
    %c128_i32_15 = arith.constant 128 : i32
    %40 = arith.minsi %c128_i32_15, %39 : i32
    %41 = arith.sitofp %40 : i32 to f32
    %42 = vector.shape_cast %37 : vector<128x128xf32> to vector<1x128x128xf32>
    %cst_16 = arith.constant dense<0.000000e+00> : vector<1xf32>
    %43 = vector.multi_reduction <add>, %42, %cst_16 [1, 2] : vector<1x128x128xf32> to vector<1xf32>
    %44 = vector.shape_cast %43 : vector<1xf32> to vector<1x1x1xf32>
    %45 = vector.extract %44[0, 0, 0] : f32 from vector<1x1x1xf32>
    %cst_17 = arith.constant 1.000000e+01 : f32
    %46 = arith.mulf %cst_17, %41 : f32
    %47 = arith.subf %45, %46 : f32
    %48 = vector.broadcast %47 : f32 to vector<8x128xf32>
    %c0_18 = arith.constant 0 : index
    %c0_19 = arith.constant 0 : index
    %49 = vector.load %arg11[%c0_18, %c0_19] : memref<8x128xf32, #tpu.memory_space<vmem>>, vector<8x128xf32>
    tpu.vector_store %arg11[%c0_18, %c0_19], %48 {strides = array<i32>} : memref<8x128xf32, #tpu.memory_space<vmem>>, vector<8x128xf32>,
    %50 = arith.truncf %13 : vector<128x128xf32> to vector<128x128xbf16>
    %c0_20 = arith.constant 0 : index
    %c0_21 = arith.constant 0 : index
    %51 = vector.load %arg6[%c0_20, %c0_21] : memref<128x128xbf16, #tpu.memory_space<vmem>>, vector<128x128xbf16>
    %cst_22 = arith.constant dense<0.000000e+00> : vector<128x128xf32>
    %52 = tpu.matmul %50, %51, %cst_22 {dimension_numbers = #tpu.dot_dimension_numbers<[1], [0], [0], [1], [0, 0, 1, 1], [], []>} : vector<128x128xbf16>, vector<128x128xbf16>, vector<128x128xf32> -> vector<128x128xf32>
    %c0_23 = arith.constant 0 : index
    %c0_24 = arith.constant 0 : index
    %53 = vector.load %arg7[%c0_23, %c0_24] : memref<1x128xf32, #tpu.memory_space<vmem>>, vector<1x128xf32>
    %54 = vector.broadcast %53 : vector<1x128xf32> to vector<128x128xf32>
    %55 = arith.addf %52, %54 : vector<128x128xf32>
    %cst_25 = arith.constant 0.000000e+00 : f32
    %56 = vector.broadcast %cst_25 : f32 to vector<128x128xf32>
    %57 = arith.maximumf %55, %56 : vector<128x128xf32>
    %58 = arith.truncf %57 : vector<128x128xf32> to vector<128x128xbf16>
    %c0_26 = arith.constant 0 : index
    %c0_27 = arith.constant 0 : index
    %59 = vector.load %arg8[%c0_26, %c0_27] : memref<128x256xbf16, #tpu.memory_space<vmem>>, vector<128x256xbf16>
    %cst_28 = arith.constant dense<0.000000e+00> : vector<128x256xf32>
    %60 = tpu.matmul %58, %59, %cst_28 {dimension_numbers = #tpu.dot_dimension_numbers<[1], [0], [0], [1], [0, 0, 1, 1], [], []>} : vector<128x128xbf16>, vector<128x256xbf16>, vector<128x256xf32> -> vector<128x256xf32>
    %c0_29 = arith.constant 0 : index
    %c0_30 = arith.constant 0 : index
    %61 = vector.load %arg9[%c0_29, %c0_30] : memref<1x256xf32, #tpu.memory_space<vmem>>, vector<1x256xf32>
    %62 = vector.broadcast %61 : vector<1x256xf32> to vector<128x256xf32>
    %63 = arith.addf %60, %62 : vector<128x256xf32>
    %64 = arith.negf %63 : vector<128x256xf32>
    %65 = math.exp %64 : vector<128x256xf32>
    %cst_31 = arith.constant 1.000000e+00 : f32
    %66 = vector.broadcast %cst_31 : f32 to vector<128x256xf32>
    %67 = arith.addf %66, %65 : vector<128x256xf32>
    %68 = arith.divf %66, %67 : vector<128x256xf32>
    %c0_32 = arith.constant 0 : index
    %c0_33 = arith.constant 0 : index
    %69 = vector.load %arg10[%c0_32, %c0_33] : memref<128x256xf32, #tpu.memory_space<vmem>>, vector<128x256xf32>
    tpu.vector_store %arg10[%c0_32, %c0_33], %68 {strides = array<i32>} : memref<128x256xf32, #tpu.memory_space<vmem>>, vector<128x256xf32>,
    return
  }
  func.func @transform_0(%arg0: i32) -> (i32, i32) {
    %c0_i32 = arith.constant 0 : i32
    %c0_i32_0 = arith.constant 0 : i32
    return %arg0, %c0_i32 : i32, i32
  }
  func.func @transform_1(%arg0: i32) -> (i32, i32) {
    %c0_i32 = arith.constant 0 : i32
    %c0_i32_0 = arith.constant 0 : i32
    %c0_i32_1 = arith.constant 0 : i32
    return %c0_i32, %c0_i32_0 : i32, i32
  }
  func.func @transform_2(%arg0: i32) -> (i32, i32) {
    %c0_i32 = arith.constant 0 : i32
    %c0_i32_0 = arith.constant 0 : i32
    %c0_i32_1 = arith.constant 0 : i32
    return %c0_i32, %c0_i32_0 : i32, i32
  }
  func.func @transform_3(%arg0: i32) -> (i32, i32) {
    %c0_i32 = arith.constant 0 : i32
    %c0_i32_0 = arith.constant 0 : i32
    %c0_i32_1 = arith.constant 0 : i32
    return %c0_i32, %c0_i32_0 : i32, i32
  }
  func.func @transform_4(%arg0: i32) -> (i32, i32) {
    %c0_i32 = arith.constant 0 : i32
    %c0_i32_0 = arith.constant 0 : i32
    %c0_i32_1 = arith.constant 0 : i32
    return %c0_i32, %c0_i32_0 : i32, i32
  }
  func.func @transform_5(%arg0: i32) -> (i32, i32) {
    %c0_i32 = arith.constant 0 : i32
    %c0_i32_0 = arith.constant 0 : i32
    %c0_i32_1 = arith.constant 0 : i32
    return %c0_i32, %c0_i32_0 : i32, i32
  }
  func.func @transform_6(%arg0: i32) -> (i32, i32) {
    %c0_i32 = arith.constant 0 : i32
    %c0_i32_0 = arith.constant 0 : i32
    %c0_i32_1 = arith.constant 0 : i32
    return %c0_i32, %c0_i32_0 : i32, i32
  }
  func.func @transform_7(%arg0: i32) -> (i32, i32) {
    %c0_i32 = arith.constant 0 : i32
    %c0_i32_0 = arith.constant 0 : i32
    %c0_i32_1 = arith.constant 0 : i32
    return %c0_i32, %c0_i32_0 : i32, i32
  }
  func.func @transform_8(%arg0: i32) -> (i32, i32) {
    %c0_i32 = arith.constant 0 : i32
    %c0_i32_0 = arith.constant 0 : i32
    %c0_i32_1 = arith.constant 0 : i32
    return %c0_i32, %c0_i32_0 : i32, i32
  }
  func.func @transform_9(%arg0: i32) -> (i32, i32) {
    %c0_i32 = arith.constant 0 : i32
    %c0_i32_0 = arith.constant 0 : i32
    return %arg0, %c0_i32 : i32, i32
  }
  func.func @transform_10(%arg0: i32) -> (i32, i32) {
    %c0_i32 = arith.constant 0 : i32
    %c0_i32_0 = arith.constant 0 : i32
    return %arg0, %c0_i32 : i32, i32
  }
}

</mosaic_0001>

<llo_original>
// kernel: tpu_custom_call.1
$region0: #{tpu_custom_call.1}
  #allocation0 [shape = 'u32[]', space=smem, size = 0x4, offset = 0x4, fixed_abs, tag = 'smem constant byte address 0x4 - core index']
  #allocation1 [shape = 'u32[72,128]{1,0:T(1,128)}', space=vmem, size = 0x9000, scoped, tag = 'internal scratch']
  %s0 = inlined_call_operand.hbm [shape: bf16[384,256], index: 0, kind: input, shape index: {}]
  %s1 = inlined_call_operand.hbm [shape: bf16[256,128], index: 1, kind: input, shape index: {}]
  %s2 = inlined_call_operand.vmem [shape: f32[1,128], index: 2, kind: input, shape index: {}]
  %s3 = inlined_call_operand.hbm [shape: bf16[128,128], index: 3, kind: input, shape index: {}]
  %s4 = inlined_call_operand.hbm [shape: f32[1,128], index: 4, kind: input, shape index: {}]
  %s5 = inlined_call_operand.hbm [shape: bf16[128,128], index: 5, kind: input, shape index: {}]
  %s6 = inlined_call_operand.vmem [shape: f32[1,128], index: 6, kind: input, shape index: {}]
  %s7 = inlined_call_operand.hbm [shape: bf16[128,256], index: 7, kind: input, shape index: {}]
  %s8 = inlined_call_operand.vmem [shape: f32[1,256], index: 8, kind: input, shape index: {}]
  %s9 = inlined_call_operand.hbm [shape: f32[384,256], index: 9, kind: output, shape index: {0}]
  %s10 = inlined_call_operand.hbm [shape: f32[24,128], index: 10, kind: output, shape index: {1}]
  %11 = xla_tuple %s9, %s10
  %s12 = sld [smem:[#allocation0]]
  $region101: #{tpu_custom_call.1} parent=0
    _
  %s14 = ssub.s32 1, %s12
  %s15 = scalar_select 0, %s14, %s12
  $region1: #{tpu_custom_call.1} parent=0
    #allocation2 [shape = 'u8[131072]{0}', space=vmem, size = 0x20000, scoped, tag = 'input window, operand 0']
    #allocation3 [shape = 's32[2]{0}', space=sflag, size = 0x8, scoped, tag = 'scoped memory for tpu_custom_call.1']
    #allocation4 [shape = 's32[2]{0}', space=sflag, size = 0x8, scoped, tag = 'scoped memory for tpu_custom_call.1']
    #allocation5 [shape = 'u8[65536]{0}', space=vmem, size = 0x10000, scoped, tag = 'input window, operand 1, single buffered']
    #allocation6 [shape = 's32[1]{0}', space=sflag, size = 0x4, scoped, tag = 'scoped memory for tpu_custom_call.1']
    #allocation7 [shape = 'u8[32768]{0}', space=vmem, size = 0x8000, scoped, tag = 'input window, operand 3, single buffered']
    #allocation8 [shape = 'u8[512]{0}', space=vmem, size = 0x400, scoped, tag = 'input window, operand 4, single buffered']
    #allocation9 [shape = 's32[1]{0}', space=sflag, size = 0x4, scoped, tag = 'scoped memory for tpu_custom_call.1']
    #allocation10 [shape = 'u8[32768]{0}', space=vmem, size = 0x8000, scoped, tag = 'input window, operand 5, single buffered']
    #allocation11 [shape = 'u8[65536]{0}', space=vmem, size = 0x10000, scoped, tag = 'input window, operand 7, single buffered']
    #allocation12 [shape = 's32[1]{0}', space=sflag, size = 0x4, scoped, tag = 'scoped memory for tpu_custom_call.1']
    #allocation13 [shape = 'u8[262144]{0}', space=vmem, size = 0x40000, scoped, tag = 'output window, operand 0']
    #allocation14 [shape = 'u8[8192]{0}', space=vmem, size = 0x2000, scoped, tag = 'output window, operand 1']
    #allocation15 [shape = 's32[2]{0}', space=sflag, size = 0x8, scoped, tag = 'scoped memory for tpu_custom_call.1']
    %16 = vsyncpa [#allocation3], 0
    %s17 = scalar_lea.sflag [#allocation3], 1
    %18 = vsyncpa %s17, 0
    %19 = vsyncpa [#allocation6], 0
    %20 = vsyncpa [#allocation9], 0
    %21 = vsyncpa [#allocation12], 0
    %22 = vsyncpa [#allocation4], 0
    %s23 = scalar_lea.sflag [#allocation4], 1
    %24 = vsyncpa %s23, 0
    %25 = vsyncpa [#allocation15], 0
    %s26 = scalar_lea.sflag [#allocation15], 1
    %27 = vsyncpa %s26, 0
    loop: start=0, step=1, limit=5
    $region2: #{tpu_custom_call.1} parent=1 // loop_pre_header
      _
    $region3: #{tpu_custom_call.1} parent=1 // loop_header
      %s29 = sphi 0, %s33
      %p30 = scmp.ge.s32.totalorder %s29, 5
      %s39 = sphi 0, %s41
      %s42 = sphi 0, %s39
      %s43 = sphi 0, %s42
      %s59 = sphi 0, %s43
      %s63 = sphi 0, %s63
      %s65 = sphi 0, %s63
      %s66 = sphi 0, %s65
      %s80 = sphi 0, %s66
      %s84 = sphi 0, %s84
      %s86 = sphi 0, %s84
      %s87 = sphi 0, %s86
      %s101 = sphi 0, %s87
      %s105 = sphi 0, %s105
      %s107 = sphi 0, %s105
      %s108 = sphi 0, %s107
      %s122 = sphi 0, %s108
      %s126 = sphi 0, %s126
      %s128 = sphi 0, %s126
      %s129 = sphi 0, %s128
      %s143 = sphi 0, %s129
      %s147 = sphi 0, %s147
      %s149 = sphi 0, %s147
      %s150 = sphi 0, %s149
      %s164 = sphi 0, %s150
      %s168 = sphi 0, %s168
      %s170 = sphi 0, %s168
      %s171 = sphi 0, %s170
      %s185 = sphi 0, %s171
      %s189 = sphi 0, %s189
      %s191 = sphi 0, %s189
      %s192 = sphi 0, %s191
      %s206 = sphi 0, %s192
      %s210 = sphi 0, %s210
      %s212 = sphi 0, %s210
      %s213 = sphi 0, %s212
      %s227 = sphi 0, %s213
      %s233 = sphi 0, %s235
      %s236 = sphi 0, %s233
      %s237 = sphi 0, %s236
      %s253 = sphi 0, %s237
      %s259 = sphi 0, %s261
      %s262 = sphi 0, %s259
      %s263 = sphi 0, %s262
      %s279 = sphi 0, %s263
    $region4: #{tpu_custom_call.1} parent=1 // loop_header_branch
      %32 = sbr.rel (%p30) target = $region8
    $region5: #{tpu_custom_call.1} parent=1 // loop_body
      %s34 = ssub.s32 %s29, 1
      %s35 = ssub.s32 %s29, 2
      %s36 = sadd.s32 %s29, 1
      %s37 = ssub.s32 %s29, %s36
      %p38 = scmp.eq.s32.totalorder %s37, 0
      %s40 = sadd.s32 %s39, 1
      %s41 = scalar_select %p38, %s39, %s40
      %p44 = pneg %p38
      %p45 = scmp.eq.s32.totalorder %s29, 2
      %p46 = por %p44, %p45
      %p47 = scmp.ne.s32.totalorder %s39, %s42
      %p48 = scmp.eq.s32.totalorder %s29, 0
      %p49 = por %p47, %p48
      %p50 = scmp.ne.s32.totalorder %s39, %s42
      %p51 = scmp.eq.s32.totalorder %s34, 2
      %p52 = por %p50, %p51
      %p53 = scmp.ne.s32.totalorder %s42, %s43
      %p54 = scmp.eq.s32.totalorder %s34, 0
      %p55 = por %p53, %p54
      %p56 = scmp.ne.s32.totalorder %s42, %s43
      %p57 = scmp.eq.s32.totalorder %s35, 2
      %p58 = por %p56, %p57
      %p60 = scmp.ne.s32.totalorder %s43, %s59
      %p61 = scmp.eq.s32.totalorder %s35, 0
      %p62 = por %p60, %p61
      %s64 = sadd.s32 %s63, 1
      %p67 = scmp.eq.s32.totalorder %s29, 2
      %p68 = scmp.ne.s32.totalorder %s63, %s65
      %p69 = scmp.eq.s32.totalorder %s29, 0
      %p70 = por %p68, %p69
      %p71 = scmp.ne.s32.totalorder %s63, %s65
      %p72 = scmp.eq.s32.totalorder %s34, 2
      %p73 = por %p71, %p72
      %p74 = scmp.ne.s32.totalorder %s65, %s66
      %p75 = scmp.eq.s32.totalorder %s34, 0
      %p76 = por %p74, %p75
      %p77 = scmp.ne.s32.totalorder %s65, %s66
      %p78 = scmp.eq.s32.totalorder %s35, 2
      %p79 = por %p77, %p78
      %p81 = scmp.ne.s32.totalorder %s66, %s80
      %p82 = scmp.eq.s32.totalorder %s35, 0
      %p83 = por %p81, %p82
      %s85 = sadd.s32 %s84, 1
      %p88 = scmp.eq.s32.totalorder %s29, 2
      %p89 = scmp.ne.s32.totalorder %s84, %s86
      %p90 = scmp.eq.s32.totalorder %s29, 0
      %p91 = por %p89, %p90
      %p92 = scmp.ne.s32.totalorder %s84, %s86
      %p93 = scmp.eq.s32.totalorder %s34, 2
      %p94 = por %p92, %p93
      %p95 = scmp.ne.s32.totalorder %s86, %s87
      %p96 = scmp.eq.s32.totalorder %s34, 0
      %p97 = por %p95, %p96
      %p98 = scmp.ne.s32.totalorder %s86, %s87
      %p99 = scmp.eq.s32.totalorder %s35, 2
      %p100 = por %p98, %p99
      %p102 = scmp.ne.s32.totalorder %s87, %s101
      %p103 = scmp.eq.s32.totalorder %s35, 0
      %p104 = por %p102, %p103
      %s106 = sadd.s32 %s105, 1
      %p109 = scmp.eq.s32.totalorder %s29, 2
      %p110 = scmp.ne.s32.totalorder %s105, %s107
      %p111 = scmp.eq.s32.totalorder %s29, 0
      %p112 = por %p110, %p111
      %p113 = scmp.ne.s32.totalorder %s105, %s107
      %p114 = scmp.eq.s32.totalorder %s34, 2
      %p115 = por %p113, %p114
      %p116 = scmp.ne.s32.totalorder %s107, %s108
      %p117 = scmp.eq.s32.totalorder %s34, 0
      %p118 = por %p116, %p117
      %p119 = scmp.ne.s32.totalorder %s107, %s108
      %p120 = scmp.eq.s32.totalorder %s35, 2
      %p121 = por %p119, %p120
      %p123 = scmp.ne.s32.totalorder %s108, %s122
      %p124 = scmp.eq.s32.totalorder %s35, 0
      %p125 = por %p123, %p124
      %s127 = sadd.s32 %s126, 1
      %p130 = scmp.eq.s32.totalorder %s29, 2
      %p131 = scmp.ne.s32.totalorder %s126, %s128
      %p132 = scmp.eq.s32.totalorder %s29, 0
      %p133 = por %p131, %p132
      %p134 = scmp.ne.s32.totalorder %s126, %s128
      %p135 = scmp.eq.s32.totalorder %s34, 2
      %p136 = por %p134, %p135
      %p137 = scmp.ne.s32.totalorder %s128, %s129
      %p138 = scmp.eq.s32.totalorder %s34, 0
      %p139 = por %p137, %p138
      %p140 = scmp.ne.s32.totalorder %s128, %s129
      %p141 = scmp.eq.s32.totalorder %s35, 2
      %p142 = por %p140, %p141
      %p144 = scmp.ne.s32.totalorder %s129, %s143
      %p145 = scmp.eq.s32.totalorder %s35, 0
      %p146 = por %p144, %p145
      %s148 = sadd.s32 %s147, 1
      %p151 = scmp.eq.s32.totalorder %s29, 2
      %p152 = scmp.ne.s32.totalorder %s147, %s149
      %p153 = scmp.eq.s32.totalorder %s29, 0
      %p154 = por %p152, %p153
      %p155 = scmp.ne.s32.totalorder %s147, %s149
      %p156 = scmp.eq.s32.totalorder %s34, 2
      %p157 = por %p155, %p156
      %p158 = scmp.ne.s32.totalorder %s149, %s150
      %p159 = scmp.eq.s32.totalorder %s34, 0
      %p160 = por %p158, %p159
      %p161 = scmp.ne.s32.totalorder %s149, %s150
      %p162 = scmp.eq.s32.totalorder %s35, 2
      %p163 = por %p161, %p162
      %p165 = scmp.ne.s32.totalorder %s150, %s164
      %p166 = scmp.eq.s32.totalorder %s35, 0
      %p167 = por %p165, %p166
      %s169 = sadd.s32 %s168, 1
      %p172 = scmp.eq.s32.totalorder %s29, 2
      %p173 = scmp.ne.s32.totalorder %s168, %s170
      %p174 = scmp.eq.s32.totalorder %s29, 0
      %p175 = por %p173, %p174
      %p176 = scmp.ne.s32.totalorder %s168, %s170
      %p177 = scmp.eq.s32.totalorder %s34, 2
      %p178 = por %p176, %p177
      %p179 = scmp.ne.s32.totalorder %s170, %s171
      %p180 = scmp.eq.s32.totalorder %s34, 0
      %p181 = por %p179, %p180
      %p182 = scmp.ne.s32.totalorder %s170, %s171
      %p183 = scmp.eq.s32.totalorder %s35, 2
      %p184 = por %p182, %p183
      %p186 = scmp.ne.s32.totalorder %s171, %s185
      %p187 = scmp.eq.s32.totalorder %s35, 0
      %p188 = por %p186, %p187
      %s190 = sadd.s32 %s189, 1
      %p193 = scmp.eq.s32.totalorder %s29, 2
      %p194 = scmp.ne.s32.totalorder %s189, %s191
      %p195 = scmp.eq.s32.totalorder %s29, 0
      %p196 = por %p194, %p195
      %p197 = scmp.ne.s32.totalorder %s189, %s191
      %p198 = scmp.eq.s32.totalorder %s34, 2
      %p199 = por %p197, %p198
      %p200 = scmp.ne.s32.totalorder %s191, %s192
      %p201 = scmp.eq.s32.totalorder %s34, 0
      %p202 = por %p200, %p201
      %p203 = scmp.ne.s32.totalorder %s191, %s192
      %p204 = scmp.eq.s32.totalorder %s35, 2
      %p205 = por %p203, %p204
      %p207 = scmp.ne.s32.totalorder %s192, %s206
      %p208 = scmp.eq.s32.totalorder %s35, 0
      %p209 = por %p207, %p208
      %s211 = sadd.s32 %s210, 1
      %p214 = scmp.eq.s32.totalorder %s29, 2
      %p215 = scmp.ne.s32.totalorder %s210, %s212
      %p216 = scmp.eq.s32.totalorder %s29, 0
      %p217 = por %p215, %p216
      %p218 = scmp.ne.s32.totalorder %s210, %s212
      %p219 = scmp.eq.s32.totalorder %s34, 2
      %p220 = por %p218, %p219
      %p221 = scmp.ne.s32.totalorder %s212, %s213
      %p222 = scmp.eq.s32.totalorder %s34, 0
      %p223 = por %p221, %p222
      %p224 = scmp.ne.s32.totalorder %s212, %s213
      %p225 = scmp.eq.s32.totalorder %s35, 2
      %p226 = por %p224, %p225
      %p228 = scmp.ne.s32.totalorder %s213, %s227
      %p229 = scmp.eq.s32.totalorder %s35, 0
      %p230 = por %p228, %p229
      %s231 = ssub.s32 %s29, %s36
      %p232 = scmp.eq.s32.totalorder %s231, 0
      %s234 = sadd.s32 %s233, 1
      %s235 = scalar_select %p232, %s233, %s234
      %p238 = pneg %p232
      %p239 = scmp.eq.s32.totalorder %s29, 2
      %p240 = por %p238, %p239
      %p241 = scmp.ne.s32.totalorder %s233, %s236
      %p242 = scmp.eq.s32.totalorder %s29, 0
      %p243 = por %p241, %p242
      %p244 = scmp.ne.s32.totalorder %s233, %s236
      %p245 = scmp.eq.s32.totalorder %s34, 2
      %p246 = por %p244, %p245
      %p247 = scmp.ne.s32.totalorder %s236, %s237
      %p248 = scmp.eq.s32.totalorder %s34, 0
      %p249 = por %p247, %p248
      %p250 = scmp.ne.s32.totalorder %s236, %s237
      %p251 = scmp.eq.s32.totalorder %s35, 2
      %p252 = por %p250, %p251
      %p254 = scmp.ne.s32.totalorder %s237, %s253
      %p255 = scmp.eq.s32.totalorder %s35, 0
      %p256 = por %p254, %p255
      %s257 = ssub.s32 %s29, %s36
      %p258 = scmp.eq.s32.totalorder %s257, 0
      %s260 = sadd.s32 %s259, 1
      %s261 = scalar_select %p258, %s259, %s260
      %p264 = pneg %p258
      %p265 = scmp.eq.s32.totalorder %s29, 2
      %p266 = por %p264, %p265
      %p267 = scmp.ne.s32.totalorder %s259, %s262
      %p268 = scmp.eq.s32.totalorder %s29, 0
      %p269 = por %p267, %p268
      %p270 = scmp.ne.s32.totalorder %s259, %s262
      %p271 = scmp.eq.s32.totalorder %s34, 2
      %p272 = por %p270, %p271
      %p273 = scmp.ne.s32.totalorder %s262, %s263
      %p274 = scmp.eq.s32.totalorder %s34, 0
      %p275 = por %p273, %p274
      %p276 = scmp.ne.s32.totalorder %s262, %s263
      %p277 = scmp.eq.s32.totalorder %s35, 2
      %p278 = por %p276, %p277
      %p280 = scmp.ne.s32.totalorder %s263, %s279
      %p281 = scmp.eq.s32.totalorder %s35, 0
      %p282 = por %p280, %p281
      %p283 = scmp.le.s32.totalorder 1, %s29
      %p284 = scmp.lt.s32.totalorder %s29, 4
      %p285 = pnand %p283, %p284
      %p286 = pneg %p285
      // Predicated region
      $region9: #{tpu_custom_call.1} parent=5 // pred_check
        _
      $region10: #{tpu_custom_call.1} parent=5 // pred_check_branch
        %288 = sbr.rel (%p285) target = $region12
      $region11: #{tpu_custom_call.1} parent=5 // pred_region
        %s289 = ssub.s32 %s29, 1
        // Predicated region
        $region13: #{tpu_custom_call.1} parent=11 // pred_check
          %p290 = pneg %p76
        $region14: #{tpu_custom_call.1} parent=11 // pred_check_branch
          %292 = sbr.rel (%p290) target = $region16
        $region15: #{tpu_custom_call.1} parent=11 // pred_region
          %294 = vsyncadd [#allocation6], 0
          %s295 = sshll.u32 %s1, 4
          %s296 = int_to_ptr.hbm [resolvable:$true] %s295
          %s297 = sshll.u32 [#allocation5], 4
          %s298 = int_to_ptr.vmem [resolvable:$true] %s297
          %303 = dma.hbm_to_vmem [thread:$0]  %s296, 2048, %s298, [#allocation6], 64, 64, 4
        $region16: #{tpu_custom_call.1} parent=11 // pred_fallthru
          _
        // Predicated region
        $region17: #{tpu_custom_call.1} parent=11 // pred_check
          %p304 = pneg %p97
        $region18: #{tpu_custom_call.1} parent=11 // pred_check_branch
          %306 = sbr.rel (%p304) target = $region20
        $region19: #{tpu_custom_call.1} parent=11 // pred_region
          _
        $region20: #{tpu_custom_call.1} parent=11 // pred_fallthru
          _
        // Predicated region
        $region21: #{tpu_custom_call.1} parent=11 // pred_check
          %p307 = pneg %p118
        $region22: #{tpu_custom_call.1} parent=11 // pred_check_branch
          %309 = sbr.rel (%p307) target = $region24
        $region23: #{tpu_custom_call.1} parent=11 // pred_region
          %311 = vsyncadd [#allocation6], 0
          %s312 = sshll.u32 %s3, 4
          %s313 = int_to_ptr.hbm [resolvable:$true] %s312
          %s314 = sshll.u32 [#allocation7], 4
          %s315 = int_to_ptr.vmem [resolvable:$true] %s314
          %320 = dma.hbm_to_vmem [thread:$0]  %s313, 1024, %s315, [#allocation6], 64, 64, 4
        $region24: #{tpu_custom_call.1} parent=11 // pred_fallthru
          _
        // Predicated region
        $region25: #{tpu_custom_call.1} parent=11 // pred_check
          %p321 = pneg %p139
        $region26: #{tpu_custom_call.1} parent=11 // pred_check_branch
          %323 = sbr.rel (%p321) target = $region28
        $region27: #{tpu_custom_call.1} parent=11 // pred_region
          %325 = vsyncadd [#allocation9], 0
          %s327 = sshll.u32 %s4, 4
          %s328 = int_to_ptr.hbm [resolvable:$true] %s327
          %s329 = sshll.u32 [#allocation8], 4
          %s330 = int_to_ptr.vmem [resolvable:$true] %s329
          %332 = dma.hbm_to_vmem [thread:$0]  %s328, 16, %s330, [#allocation9]
        $region28: #{tpu_custom_call.1} parent=11 // pred_fallthru
          _
        // Predicated region
        $region29: #{tpu_custom_call.1} parent=11 // pred_check
          %p333 = pneg %p160
        $region30: #{tpu_custom_call.1} parent=11 // pred_check_branch
          %335 = sbr.rel (%p333) target = $region32
        $region31: #{tpu_custom_call.1} parent=11 // pred_region
          %337 = vsyncadd [#allocation9], 0
          %s338 = sshll.u32 %s5, 4
          %s339 = int_to_ptr.hbm [resolvable:$true] %s338
          %s340 = sshll.u32 [#allocation10], 4
          %s341 = int_to_ptr.vmem [resolvable:$true] %s340
          %346 = dma.hbm_to_vmem [thread:$0]  %s339, 1024, %s341, [#allocation9], 64, 64, 4
        $region32: #{tpu_custom_call.1} parent=11 // pred_fallthru
          _
        // Predicated region
        $region33: #{tpu_custom_call.1} parent=11 // pred_check
          %p347 = pneg %p181
        $region34: #{tpu_custom_call.1} parent=11 // pred_check_branch
          %349 = sbr.rel (%p347) target = $region36
        $region35: #{tpu_custom_call.1} parent=11 // pred_region
          _
        $region36: #{tpu_custom_call.1} parent=11 // pred_fallthru
          _
        // Predicated region
        $region37: #{tpu_custom_call.1} parent=11 // pred_check
          %p350 = pneg %p202
        $region38: #{tpu_custom_call.1} parent=11 // pred_check_branch
          %352 = sbr.rel (%p350) target = $region40
        $region39: #{tpu_custom_call.1} parent=11 // pred_region
          %354 = vsyncadd [#allocation12], 0
          %s355 = sshll.u32 %s7, 4
          %s356 = int_to_ptr.hbm [resolvable:$true] %s355
          %s357 = sshll.u32 [#allocation11], 4
          %s358 = int_to_ptr.vmem [resolvable:$true] %s357
          %363 = dma.hbm_to_vmem [thread:$0]  %s356, 2048, %s358, [#allocation12], 128, 128, 8
        $region40: #{tpu_custom_call.1} parent=11 // pred_fallthru
          _
        // Predicated region
        $region41: #{tpu_custom_call.1} parent=11 // pred_check
          %p364 = pneg %p223
        $region42: #{tpu_custom_call.1} parent=11 // pred_check_branch
          %366 = sbr.rel (%p364) target = $region44
        $region43: #{tpu_custom_call.1} parent=11 // pred_region
          _
        $region44: #{tpu_custom_call.1} parent=11 // pred_fallthru
          _
      $region12: #{tpu_custom_call.1} parent=5 // pred_fallthru
        _
      %p367 = scmp.lt.s32.totalorder %s29, 3
      // Predicated region
      $region45: #{tpu_custom_call.1} parent=5 // pred_check
        %p368 = pneg %p367
      $region46: #{tpu_custom_call.1} parent=5 // pred_check_branch
        %370 = sbr.rel (%p368) target = $region48
      $region47: #{tpu_custom_call.1} parent=5 // pred_region
        // Predicated region
        $region49: #{tpu_custom_call.1} parent=47 // pred_check
          %p371 = pneg %p49
        $region50: #{tpu_custom_call.1} parent=47 // pred_check_branch
          %373 = sbr.rel (%p371) target = $region52
        $region51: #{tpu_custom_call.1} parent=47 // pred_region
          %s374 = sand.u32 %s39, 1
          %s375 = scalar_lea.sflag [#allocation3], %s374
          %s376 = sand.u32 %s39, 1
          %s377 = smul.addr %s376, 128
          %s378 = scalar_lea.vmem [#allocation2], %s377
          %s379 = smul.u32 16, %s29
          %381 = vsyncadd %s375, 0
          %s382 = smul.addr %s379, 2
          %s383 = smul.addr %s382, 4
          %s384 = scalar_lea.hbm %s0, %s383
          %s385 = sshll.u32 %s384, 4
          %s386 = int_to_ptr.hbm [resolvable:$true] %s385
          %s387 = sshll.u32 %s378, 4
          %s388 = int_to_ptr.vmem [resolvable:$true] %s387
          %393 = dma.hbm_to_vmem [thread:$0]  %s386, 2048, %s388, %s375, 128, 128, 8
        $region52: #{tpu_custom_call.1} parent=47 // pred_fallthru
          _
      $region48: #{tpu_custom_call.1} parent=5 // pred_fallthru
        _
      %p394 = scmp.le.s32.totalorder 1, %s29
      %p395 = scmp.lt.s32.totalorder %s29, 4
      %p396 = pnand %p394, %p395
      %p397 = pneg %p396
      // Predicated region
      $region53: #{tpu_custom_call.1} parent=5 // pred_check
        _
      $region54: #{tpu_custom_call.1} parent=5 // pred_check_branch
        %399 = sbr.rel (%p396) target = $region56
      $region55: #{tpu_custom_call.1} parent=5 // pred_region
        %s400 = ssub.s32 %s29, 1
        %s401 = sand.u32 %s42, 1
        %s402 = scalar_lea.sflag [#allocation3], %s401
        %s403 = sand.u32 %s42, 1
        %s404 = smul.addr %s403, 128
        %s405 = scalar_lea.vmem [#allocation2], %s404
        // Predicated region
        $region57: #{tpu_custom_call.1} parent=55 // pred_check
          %p406 = pneg %p55
        $region58: #{tpu_custom_call.1} parent=55 // pred_check_branch
          %408 = sbr.rel (%p406) target = $region60
        $region59: #{tpu_custom_call.1} parent=55 // pred_region
          %410 = dma.done %s402, 2048
        $region60: #{tpu_custom_call.1} parent=55 // pred_fallthru
          _
        // Predicated region
        $region61: #{tpu_custom_call.1} parent=55 // pred_check
          %p411 = pneg %p76
        $region62: #{tpu_custom_call.1} parent=55 // pred_check_branch
          %413 = sbr.rel (%p411) target = $region64
        $region63: #{tpu_custom_call.1} parent=55 // pred_region
          %415 = dma.done [#allocation6], 2048
        $region64: #{tpu_custom_call.1} parent=55 // pred_fallthru
          _
        // Predicated region
        $region65: #{tpu_custom_call.1} parent=55 // pred_check
          %p416 = pneg %p118
        $region66: #{tpu_custom_call.1} parent=55 // pred_check_branch
          %418 = sbr.rel (%p416) target = $region68
        $region67: #{tpu_custom_call.1} parent=55 // pred_region
          %420 = dma.done [#allocation6], 1024
        $region68: #{tpu_custom_call.1} parent=55 // pred_fallthru
          _
        // Predicated region
        $region69: #{tpu_custom_call.1} parent=55 // pred_check
          %p421 = pneg %p139
        $region70: #{tpu_custom_call.1} parent=55 // pred_check_branch
          %423 = sbr.rel (%p421) target = $region72
        $region71: #{tpu_custom_call.1} parent=55 // pred_region
          %425 = dma.done [#allocation9], 16
        $region72: #{tpu_custom_call.1} parent=55 // pred_fallthru
          _
        // Predicated region
        $region73: #{tpu_custom_call.1} parent=55 // pred_check
          %p426 = pneg %p160
        $region74: #{tpu_custom_call.1} parent=55 // pred_check_branch
          %428 = sbr.rel (%p426) target = $region76
        $region75: #{tpu_custom_call.1} parent=55 // pred_region
          %430 = dma.done [#allocation9], 1024
        $region76: #{tpu_custom_call.1} parent=55 // pred_fallthru
          _
        // Predicated region
        $region77: #{tpu_custom_call.1} parent=55 // pred_check
          %p431 = pneg %p202
        $region78: #{tpu_custom_call.1} parent=55 // pred_check_branch
          %433 = sbr.rel (%p431) target = $region80
        $region79: #{tpu_custom_call.1} parent=55 // pred_region
          %435 = dma.done [#allocation12], 2048
        $region80: #{tpu_custom_call.1} parent=55 // pred_fallthru
          _
        %s436 = sand.u32 %s42, 1
        %s437 = scalar_lea.sflag [#allocation3], %s436
        %s438 = sand.u32 %s42, 1
        %s439 = smul.addr %s438, 128
        %s440 = scalar_lea.vmem [#allocation2], %s439
        %p441 = pneg %p55
        %p442 = pneg %p52
        %p443 = pneg %p76
        %p444 = pneg %p73
        %p445 = pneg %p97
        %p446 = pneg %p94
        %p447 = pneg %p118
        %p448 = pneg %p115
        %p449 = pneg %p139
        %p450 = pneg %p136
        %p451 = pneg %p160
        %p452 = pneg %p157
        %p453 = pneg %p181
        %p454 = pneg %p178
        %p455 = pneg %p202
        %p456 = pneg %p199
        %p457 = pneg %p223
        %p458 = pneg %p220
        %p459 = pneg %p249
        %p460 = pneg %p246
        %s461 = sand.u32 %s236, 1
        %s462 = scalar_lea.sflag [#allocation4], %s461
        %s463 = sand.u32 %s236, 1
        %s464 = smul.addr %s463, 256
        %s465 = scalar_lea.vmem [#allocation13], %s464
        %p466 = pneg %p275
        %p467 = pneg %p272
        %s468 = sand.u32 %s262, 1
        %s469 = scalar_lea.sflag [#allocation15], %s468
        %s470 = sand.u32 %s262, 1
        %s471 = smul.addr %s470, 8
        %s472 = scalar_lea.vmem [#allocation14], %s471
        %s473 = smul.u32 16, %s34
        %s474 = smul.u32 16, %s34
        %v475 = vld [vmem:[%s405] sm:$0xff]
        %v476 = vld [vmem:[%s405 + $0x8] sm:$0xff]
        %v477 = vld [vmem:[%s405 + $0x10] sm:$0xff]
        %v478 = vld [vmem:[%s405 + $0x18] sm:$0xff]
        %v479 = vld [vmem:[%s405 + $0x20] sm:$0xff]
        %v480 = vld [vmem:[%s405 + $0x28] sm:$0xff]
        %v481 = vld [vmem:[%s405 + $0x30] sm:$0xff]
        %v482 = vld [vmem:[%s405 + $0x38] sm:$0xff]
        %v483 = vld [vmem:[%s405 + $0x40] sm:$0xff]
        %v484 = vld [vmem:[%s405 + $0x48] sm:$0xff]
        %v485 = vld [vmem:[%s405 + $0x50] sm:$0xff]
        %v486 = vld [vmem:[%s405 + $0x58] sm:$0xff]
        %v487 = vld [vmem:[%s405 + $0x60] sm:$0xff]
        %v488 = vld [vmem:[%s405 + $0x68] sm:$0xff]
        %v489 = vld [vmem:[%s405 + $0x70] sm:$0xff]
        %v490 = vld [vmem:[%s405 + $0x78] sm:$0xff]
        %v491 = vld [vmem:[#allocation5] sm:$0xf]
        %v492 = vld [vmem:[#allocation5 + $0x4] sm:$0xf]
        %v493 = vld [vmem:[#allocation5 + $0x8] sm:$0xf]
        %v494 = vld [vmem:[#allocation5 + $0xc] sm:$0xf]
        %v495 = vld [vmem:[#allocation5 + $0x10] sm:$0xf]
        %v496 = vld [vmem:[#allocation5 + $0x14] sm:$0xf]
        %v497 = vld [vmem:[#allocation5 + $0x18] sm:$0xf]
        %v498 = vld [vmem:[#allocation5 + $0x1c] sm:$0xf]
        %v499 = vld [vmem:[#allocation5 + $0x20] sm:$0xf]
        %v500 = vld [vmem:[#allocation5 + $0x24] sm:$0xf]
        %v501 = vld [vmem:[#allocation5 + $0x28] sm:$0xf]
        %v502 = vld [vmem:[#allocation5 + $0x2c] sm:$0xf]
        %v503 = vld [vmem:[#allocation5 + $0x30] sm:$0xf]
        %v504 = vld [vmem:[#allocation5 + $0x34] sm:$0xf]
        %v505 = vld [vmem:[#allocation5 + $0x38] sm:$0xf]
        %v506 = vld [vmem:[#allocation5 + $0x3c] sm:$0xf]
        %v507 = vld [vmem:[#allocation5 + $0x40] sm:$0xf]
        %v508 = vld [vmem:[#allocation5 + $0x44] sm:$0xf]
        %v509 = vld [vmem:[#allocation5 + $0x48] sm:$0xf]
        %v510 = vld [vmem:[#allocation5 + $0x4c] sm:$0xf]
        %v511 = vld [vmem:[#allocation5 + $0x50] sm:$0xf]
        %v512 = vld [vmem:[#allocation5 + $0x54] sm:$0xf]
        %v513 = vld [vmem:[#allocation5 + $0x58] sm:$0xf]
        %v514 = vld [vmem:[#allocation5 + $0x5c] sm:$0xf]
        %v515 = vld [vmem:[#allocation5 + $0x60] sm:$0xf]
        %v516 = vld [vmem:[#allocation5 + $0x64] sm:$0xf]
        %v517 = vld [vmem:[#allocation5 + $0x68] sm:$0xf]
        %v518 = vld [vmem:[#allocation5 + $0x6c] sm:$0xf]
        %v519 = vld [vmem:[#allocation5 + $0x70] sm:$0xf]
        %v520 = vld [vmem:[#allocation5 + $0x74] sm:$0xf]
        %v521 = vld [vmem:[#allocation5 + $0x78] sm:$0xf]
        %v522 = vld [vmem:[#allocation5 + $0x7c] sm:$0xf]
        %v523 = vld [vmem:[%s2] sm:$0x1]
        %v525 = vperm.slane %v523, 0
        %v543 = vunpack.c.l.b16 %v475
        %v544 = vunpack.c.h.b16 %v475
        %v545 = vunpack.c.l.b16 %v476
        %v546 = vunpack.c.h.b16 %v476
        %v547 = vunpack.c.l.b16 %v477
        %v548 = vunpack.c.h.b16 %v477
        %v549 = vunpack.c.l.b16 %v478
        %v550 = vunpack.c.h.b16 %v478
        %v551 = vunpack.c.l.b16 %v479
        %v552 = vunpack.c.h.b16 %v479
        %v553 = vunpack.c.l.b16 %v480
        %v554 = vunpack.c.h.b16 %v480
        %v555 = vunpack.c.l.b16 %v481
        %v556 = vunpack.c.h.b16 %v481
        %v557 = vunpack.c.l.b16 %v482
        %v558 = vunpack.c.h.b16 %v482
        %v559 = vunpack.c.l.b16 %v483
        %v560 = vunpack.c.h.b16 %v483
        %v561 = vunpack.c.l.b16 %v484
        %v562 = vunpack.c.h.b16 %v484
        %v563 = vunpack.c.l.b16 %v485
        %v564 = vunpack.c.h.b16 %v485
        %v565 = vunpack.c.l.b16 %v486
        %v566 = vunpack.c.h.b16 %v486
        %v567 = vunpack.c.l.b16 %v487
        %v568 = vunpack.c.h.b16 %v487
        %v569 = vunpack.c.l.b16 %v488
        %v570 = vunpack.c.h.b16 %v488
        %v571 = vunpack.c.l.b16 %v489
        %v572 = vunpack.c.h.b16 %v489
        %v573 = vunpack.c.l.b16 %v490
        %v574 = vunpack.c.h.b16 %v490
        %v575 = vpack.c.b16 %v545, %v543
        %v576 = vpack.c.b16 %v546, %v544
        %v577 = vpack.c.b16 %v549, %v547
        %v578 = vpack.c.b16 %v550, %v548
        %v579 = vpack.c.b16 %v553, %v551
        %v580 = vpack.c.b16 %v554, %v552
        %v581 = vpack.c.b16 %v557, %v555
        %v582 = vpack.c.b16 %v558, %v556
        %v583 = vpack.c.b16 %v561, %v559
        %v584 = vpack.c.b16 %v562, %v560
        %v585 = vpack.c.b16 %v565, %v563
        %v586 = vpack.c.b16 %v566, %v564
        %v587 = vpack.c.b16 %v569, %v567
        %v588 = vpack.c.b16 %v570, %v568
        %v589 = vpack.c.b16 %v573, %v571
        %v590 = vpack.c.b16 %v574, %v572
        %v639 = vunpack.c.l.b16 %v491
        %v640 = vunpack.c.l.b16 %v492
        %v641 = vunpack.c.l.b16 %v493
        %v642 = vunpack.c.l.b16 %v494
        %v643 = vunpack.c.l.b16 %v495
        %v644 = vunpack.c.l.b16 %v496
        %v645 = vunpack.c.l.b16 %v497
        %v646 = vunpack.c.l.b16 %v498
        %v647 = vunpack.c.l.b16 %v499
        %v648 = vunpack.c.l.b16 %v500
        %v649 = vunpack.c.l.b16 %v501
        %v650 = vunpack.c.l.b16 %v502
        %v651 = vunpack.c.l.b16 %v503
        %v652 = vunpack.c.l.b16 %v504
        %v653 = vunpack.c.l.b16 %v505
        %v654 = vunpack.c.l.b16 %v506
        %v655 = vunpack.c.l.b16 %v507
        %v656 = vunpack.c.l.b16 %v508
        %v657 = vunpack.c.l.b16 %v509
        %v658 = vunpack.c.l.b16 %v510
        %v659 = vunpack.c.l.b16 %v511
        %v660 = vunpack.c.l.b16 %v512
        %v661 = vunpack.c.l.b16 %v513
        %v662 = vunpack.c.l.b16 %v514
        %v663 = vunpack.c.l.b16 %v515
        %v664 = vunpack.c.l.b16 %v516
        %v665 = vunpack.c.l.b16 %v517
        %v666 = vunpack.c.l.b16 %v518
        %v667 = vunpack.c.l.b16 %v519
        %v668 = vunpack.c.l.b16 %v520
        %v669 = vunpack.c.l.b16 %v521
        %v670 = vunpack.c.l.b16 %v522
        %v671 = vpack.c.b16 %v640, %v639
        %v672 = vpack.c.b16 %v642, %v641
        %v673 = vpack.c.b16 %v644, %v643
        %v674 = vpack.c.b16 %v646, %v645
        %v675 = vpack.c.b16 %v648, %v647
        %v676 = vpack.c.b16 %v650, %v649
        %v677 = vpack.c.b16 %v652, %v651
        %v678 = vpack.c.b16 %v654, %v653
        %v679 = vpack.c.b16 %v656, %v655
        %v680 = vpack.c.b16 %v658, %v657
        %v681 = vpack.c.b16 %v660, %v659
        %v682 = vpack.c.b16 %v662, %v661
        %v683 = vpack.c.b16 %v664, %v663
        %v684 = vpack.c.b16 %v666, %v665
        %v685 = vpack.c.b16 %v668, %v667
        %v686 = vpack.c.b16 %v670, %v669
        %703 = vmatpush.bf16.msra.mxu0 %v678
        %704 = vmatpush.bf16.msra.mxu0 %v677
        %705 = vmatpush.bf16.msra.mxu0 %v676
        %706 = vmatpush.bf16.msra.mxu0 %v675
        %707 = vmatpush.bf16.msra.mxu0 %v674
        %708 = vmatpush.bf16.msra.mxu0 %v673
        %709 = vmatpush.bf16.msra.mxu0 %v672
        %710 = vmatpush.bf16.msra.mxu0 %v671
        %711 = vmatmul.bf16.gmra.mxu0 %v575
        %v712 = vpop.f32.mrf.mxu0
        %v713 = vadd.f32 %v525, %v712
        %v714 = vpop.f32.mrf.mxu0
        %v715 = vadd.f32 %v525, %v714
        %716 = vmatmul.bf16.gmra.mxu0 %v577
        %v717 = vpop.f32.mrf.mxu0
        %v718 = vadd.f32 %v525, %v717
        %v719 = vpop.f32.mrf.mxu0
        %v720 = vadd.f32 %v525, %v719
        %721 = vmatmul.bf16.gmra.mxu0 %v579
        %v722 = vpop.f32.mrf.mxu0
        %v723 = vadd.f32 %v525, %v722
        %v724 = vpop.f32.mrf.mxu0
        %v725 = vadd.f32 %v525, %v724
        %726 = vmatmul.bf16.gmra.mxu0 %v581
        %v727 = vpop.f32.mrf.mxu0
        %v728 = vadd.f32 %v525, %v727
        %v729 = vpop.f32.mrf.mxu0
        %v730 = vadd.f32 %v525, %v729
        %731 = vmatmul.bf16.gmra.mxu0 %v583
        %v732 = vpop.f32.mrf.mxu0
        %v733 = vadd.f32 %v525, %v732
        %v734 = vpop.f32.mrf.mxu0
        %v735 = vadd.f32 %v525, %v734
        %736 = vmatmul.bf16.gmra.mxu0 %v585
        %v737 = vpop.f32.mrf.mxu0
        %v738 = vadd.f32 %v525, %v737
        %v739 = vpop.f32.mrf.mxu0
        %v740 = vadd.f32 %v525, %v739
        %741 = vmatmul.bf16.gmra.mxu0 %v587
        %v742 = vpop.f32.mrf.mxu0
        %v743 = vadd.f32 %v525, %v742
        %v744 = vpop.f32.mrf.mxu0
        %v745 = vadd.f32 %v525, %v744
        %746 = vmatmul.bf16.gmra.mxu0 %v589
        %v747 = vpop.f32.mrf.mxu0
        %v748 = vadd.f32 %v525, %v747
        %v749 = vpop.f32.mrf.mxu0
        %v750 = vadd.f32 %v525, %v749
        %751 = vdwg.mxu0
        %752 = vmatpush.bf16.msra.mxu0 %v686
        %753 = vmatpush.bf16.msra.mxu0 %v685
        %754 = vmatpush.bf16.msra.mxu0 %v684
        %755 = vmatpush.bf16.msra.mxu0 %v683
        %756 = vmatpush.bf16.msra.mxu0 %v682
        %757 = vmatpush.bf16.msra.mxu0 %v681
        %758 = vmatpush.bf16.msra.mxu0 %v680
        %759 = vmatpush.bf16.msra.mxu0 %v679
        %760 = vmatmul.bf16.gmra.mxu0 %v576
        %v761 = vpop.f32.mrf.mxu0
        %v762 = vadd.f32 %v713, %v761
        %v763 = vpop.f32.mrf.mxu0
        %v764 = vadd.f32 %v715, %v763
        %765 = vmatmul.bf16.gmra.mxu0 %v578
        %v766 = vpop.f32.mrf.mxu0
        %v767 = vadd.f32 %v718, %v766
        %v768 = vpop.f32.mrf.mxu0
        %v769 = vadd.f32 %v720, %v768
        %770 = vmatmul.bf16.gmra.mxu0 %v580
        %v771 = vpop.f32.mrf.mxu0
        %v772 = vadd.f32 %v723, %v771
        %v773 = vpop.f32.mrf.mxu0
        %v774 = vadd.f32 %v725, %v773
        %775 = vmatmul.bf16.gmra.mxu0 %v582
        %v776 = vpop.f32.mrf.mxu0
        %v777 = vadd.f32 %v728, %v776
        %v778 = vpop.f32.mrf.mxu0
        %v779 = vadd.f32 %v730, %v778
        %780 = vmatmul.bf16.gmra.mxu0 %v584
        %v781 = vpop.f32.mrf.mxu0
        %v782 = vadd.f32 %v733, %v781
        %v783 = vpop.f32.mrf.mxu0
        %v784 = vadd.f32 %v735, %v783
        %785 = vmatmul.bf16.gmra.mxu0 %v586
        %v786 = vpop.f32.mrf.mxu0
        %v787 = vadd.f32 %v738, %v786
        %v788 = vpop.f32.mrf.mxu0
        %v789 = vadd.f32 %v740, %v788
        %790 = vmatmul.bf16.gmra.mxu0 %v588
        %v791 = vpop.f32.mrf.mxu0
        %v792 = vadd.f32 %v743, %v791
        %v793 = vpop.f32.mrf.mxu0
        %v794 = vadd.f32 %v745, %v793
        %795 = vmatmul.bf16.gmra.mxu0 %v590
        %v796 = vpop.f32.mrf.mxu0
        %v797 = vadd.f32 %v748, %v796
        %v798 = vpop.f32.mrf.mxu0
        %v799 = vadd.f32 %v750, %v798
        %800 = vdwg.mxu0
        %v801 = vmax.f32 %v762, 0.0
        %v802 = vmax.f32 %v764, 0.0
        %v803 = vmax.f32 %v767, 0.0
        %v804 = vmax.f32 %v769, 0.0
        %v805 = vmax.f32 %v772, 0.0
        %v806 = vmax.f32 %v774, 0.0
        %v807 = vmax.f32 %v777, 0.0
        %v808 = vmax.f32 %v779, 0.0
        %v809 = vmax.f32 %v782, 0.0
        %v810 = vmax.f32 %v784, 0.0
        %v811 = vmax.f32 %v787, 0.0
        %v812 = vmax.f32 %v789, 0.0
        %v813 = vmax.f32 %v792, 0.0
        %v814 = vmax.f32 %v794, 0.0
        %v815 = vmax.f32 %v797, 0.0
        %v816 = vmax.f32 %v799, 0.0
        %v817 = vpack.c.bf16 %v802, %v801
        %v818 = vpack.c.bf16 %v804, %v803
        %v819 = vpack.c.bf16 %v806, %v805
        %v820 = vpack.c.bf16 %v808, %v807
        %v821 = vpack.c.bf16 %v810, %v809
        %v822 = vpack.c.bf16 %v812, %v811
        %v823 = vpack.c.bf16 %v814, %v813
        %v824 = vpack.c.bf16 %v816, %v815
        %v825 = vld [vmem:[#allocation7] sm:$0xf]
        %v826 = vld [vmem:[#allocation7 + $0x4] sm:$0xf]
        %v827 = vld [vmem:[#allocation7 + $0x8] sm:$0xf]
        %v828 = vld [vmem:[#allocation7 + $0xc] sm:$0xf]
        %v829 = vld [vmem:[#allocation7 + $0x10] sm:$0xf]
        %v830 = vld [vmem:[#allocation7 + $0x14] sm:$0xf]
        %v831 = vld [vmem:[#allocation7 + $0x18] sm:$0xf]
        %v832 = vld [vmem:[#allocation7 + $0x1c] sm:$0xf]
        %v833 = vld [vmem:[#allocation7 + $0x20] sm:$0xf]
        %v834 = vld [vmem:[#allocation7 + $0x24] sm:$0xf]
        %v835 = vld [vmem:[#allocation7 + $0x28] sm:$0xf]
        %v836 = vld [vmem:[#allocation7 + $0x2c] sm:$0xf]
        %v837 = vld [vmem:[#allocation7 + $0x30] sm:$0xf]
        %v838 = vld [vmem:[#allocation7 + $0x34] sm:$0xf]
        %v839 = vld [vmem:[#allocation7 + $0x38] sm:$0xf]
        %v840 = vld [vmem:[#allocation7 + $0x3c] sm:$0xf]
        %v841 = vld [vmem:[#allocation8] sm:$0x1]
        %v843 = vperm.slane %v841, 0
        %v861 = vunpack.c.l.b16 %v825
        %v862 = vunpack.c.l.b16 %v826
        %v863 = vunpack.c.l.b16 %v827
        %v864 = vunpack.c.l.b16 %v828
        %v865 = vunpack.c.l.b16 %v829
        %v866 = vunpack.c.l.b16 %v830
        %v867 = vunpack.c.l.b16 %v831
        %v868 = vunpack.c.l.b16 %v832
        %v869 = vunpack.c.l.b16 %v833
        %v870 = vunpack.c.l.b16 %v834
        %v871 = vunpack.c.l.b16 %v835
        %v872 = vunpack.c.l.b16 %v836
        %v873 = vunpack.c.l.b16 %v837
        %v874 = vunpack.c.l.b16 %v838
        %v875 = vunpack.c.l.b16 %v839
        %v876 = vunpack.c.l.b16 %v840
        %v877 = vpack.c.b16 %v862, %v861
        %v878 = vpack.c.b16 %v864, %v863
        %v879 = vpack.c.b16 %v866, %v865
        %v880 = vpack.c.b16 %v868, %v867
        %v881 = vpack.c.b16 %v870, %v869
        %v882 = vpack.c.b16 %v872, %v871
        %v883 = vpack.c.b16 %v874, %v873
        %v884 = vpack.c.b16 %v876, %v875
        %893 = vmatpush.bf16.msra.mxu0 %v884
        %894 = vmatpush.bf16.msra.mxu0 %v883
        %895 = vmatpush.bf16.msra.mxu0 %v882
        %896 = vmatpush.bf16.msra.mxu0 %v881
        %897 = vmatpush.bf16.msra.mxu0 %v880
        %898 = vmatpush.bf16.msra.mxu0 %v879
        %899 = vmatpush.bf16.msra.mxu0 %v878
        %900 = vmatpush.bf16.msra.mxu0 %v877
        %901 = vmatmul.bf16.gmra.mxu0 %v817
        %v902 = vpop.f32.mrf.mxu0
        %v903 = vadd.f32 %v843, %v902
        %v904 = vpop.f32.mrf.mxu0
        %v905 = vadd.f32 %v843, %v904
        %906 = vmatmul.bf16.gmra.mxu0 %v818
        %v907 = vpop.f32.mrf.mxu0
        %v908 = vadd.f32 %v843, %v907
        %v909 = vpop.f32.mrf.mxu0
        %v910 = vadd.f32 %v843, %v909
        %911 = vmatmul.bf16.gmra.mxu0 %v819
        %v912 = vpop.f32.mrf.mxu0
        %v913 = vadd.f32 %v843, %v912
        %v914 = vpop.f32.mrf.mxu0
        %v915 = vadd.f32 %v843, %v914
        %916 = vmatmul.bf16.gmra.mxu0 %v820
        %v917 = vpop.f32.mrf.mxu0
        %v918 = vadd.f32 %v843, %v917
        %v919 = vpop.f32.mrf.mxu0
        %v920 = vadd.f32 %v843, %v919
        %921 = vmatmul.bf16.gmra.mxu0 %v821
        %v922 = vpop.f32.mrf.mxu0
        %v923 = vadd.f32 %v843, %v922
        %v924 = vpop.f32.mrf.mxu0
        %v925 = vadd.f32 %v843, %v924
        %926 = vmatmul.bf16.gmra.mxu0 %v822
        %v927 = vpop.f32.mrf.mxu0
        %v928 = vadd.f32 %v843, %v927
        %v929 = vpop.f32.mrf.mxu0
        %v930 = vadd.f32 %v843, %v929
        %931 = vmatmul.bf16.gmra.mxu0 %v823
        %v932 = vpop.f32.mrf.mxu0
        %v933 = vadd.f32 %v843, %v932
        %v934 = vpop.f32.mrf.mxu0
        %v935 = vadd.f32 %v843, %v934
        %936 = vmatmul.bf16.gmra.mxu0 %v824
        %v937 = vpop.f32.mrf.mxu0
        %v938 = vadd.f32 %v843, %v937
        %v939 = vpop.f32.mrf.mxu0
        %v940 = vadd.f32 %v843, %v939
        %941 = vdwg.mxu0
        %v942 = vlaneseq
        %v943 = vand.u32 %v942, 127
        %v944 = vlaneseq
        %v945 = vshrl.u32 %v944, 7
        %v946 = vadd.s32 %v945, 8
        %v947 = vadd.s32 %v945, 16
        %v948 = vadd.s32 %v945, 24
        %v949 = vadd.s32 %v945, 32
        %v950 = vadd.s32 %v945, 40
        %v951 = vadd.s32 %v945, 48
        %v952 = vadd.s32 %v945, 56
        %v953 = vadd.s32 %v945, 64
        %v954 = vadd.s32 %v945, 72
        %v955 = vadd.s32 %v945, 80
        %v956 = vadd.s32 %v945, 88
        %v957 = vadd.s32 %v945, 96
        %v958 = vadd.s32 %v945, 104
        %v959 = vadd.s32 %v945, 112
        %v960 = vadd.s32 %v945, 120
        %s961 = smul.u32 %s34, 128
        %v962 = vstv %s961
        %v963 = vadd.s32 %v945, %v962
        %v964 = vadd.s32 %v946, %v962
        %v965 = vadd.s32 %v947, %v962
        %v966 = vadd.s32 %v948, %v962
        %v967 = vadd.s32 %v949, %v962
        %v968 = vadd.s32 %v950, %v962
        %v969 = vadd.s32 %v951, %v962
        %v970 = vadd.s32 %v952, %v962
        %v971 = vadd.s32 %v953, %v962
        %v972 = vadd.s32 %v954, %v962
        %v973 = vadd.s32 %v955, %v962
        %v974 = vadd.s32 %v956, %v962
        %v975 = vadd.s32 %v957, %v962
        %v976 = vadd.s32 %v958, %v962
        %v977 = vadd.s32 %v959, %v962
        %v978 = vadd.s32 %v960, %v962
        %vm979 = vcmp.lt.s32.totalorder %v963, 300
        %vm980 = vcmp.lt.s32.totalorder %v964, 300
        %vm981 = vcmp.lt.s32.totalorder %v965, 300
        %vm982 = vcmp.lt.s32.totalorder %v966, 300
        %vm983 = vcmp.lt.s32.totalorder %v967, 300
        %vm984 = vcmp.lt.s32.totalorder %v968, 300
        %vm985 = vcmp.lt.s32.totalorder %v969, 300
        %vm986 = vcmp.lt.s32.totalorder %v970, 300
        %vm987 = vcmp.lt.s32.totalorder %v971, 300
        %vm988 = vcmp.lt.s32.totalorder %v972, 300
        %vm989 = vcmp.lt.s32.totalorder %v973, 300
        %vm990 = vcmp.lt.s32.totalorder %v974, 300
        %vm991 = vcmp.lt.s32.totalorder %v975, 300
        %vm992 = vcmp.lt.s32.totalorder %v976, 300
        %vm993 = vcmp.lt.s32.totalorder %v977, 300
        %vm994 = vcmp.lt.s32.totalorder %v978, 300
        %vm995 = vcmp.lt.s32.totalorder %v943, 20
        %vm996 = vcmp.ge.s32.totalorder %v943, 64
        %vm997 = vcmp.lt.s32.totalorder %v943, 84
        %vm998 = vmand %vm996, %vm997
        %vm999 = vmand %vm979, %vm995
        %vm1000 = vmand %vm980, %vm995
        %vm1001 = vmand %vm981, %vm995
        %vm1002 = vmand %vm982, %vm995
        %vm1003 = vmand %vm983, %vm995
        %vm1004 = vmand %vm984, %vm995
        %vm1005 = vmand %vm985, %vm995
        %vm1006 = vmand %vm986, %vm995
        %vm1007 = vmand %vm987, %vm995
        %vm1008 = vmand %vm988, %vm995
        %vm1009 = vmand %vm989, %vm995
        %vm1010 = vmand %vm990, %vm995
        %vm1011 = vmand %vm991, %vm995
        %vm1012 = vmand %vm992, %vm995
        %vm1013 = vmand %vm993, %vm995
        %vm1014 = vmand %vm994, %vm995
        %v1015 = vmul.f32 %v903, %v903
        %v1016 = vmul.f32 %v905, %v905
        %v1017 = vmul.f32 %v908, %v908
        %v1018 = vmul.f32 %v910, %v910
        %v1019 = vmul.f32 %v913, %v913
        %v1020 = vmul.f32 %v915, %v915
        %v1021 = vmul.f32 %v918, %v918
        %v1022 = vmul.f32 %v920, %v920
        %v1023 = vmul.f32 %v923, %v923
        %v1024 = vmul.f32 %v925, %v925
        %v1025 = vmul.f32 %v928, %v928
        %v1026 = vmul.f32 %v930, %v930
        %v1027 = vmul.f32 %v933, %v933
        %v1028 = vmul.f32 %v935, %v935
        %v1029 = vmul.f32 %v938, %v938
        %v1030 = vmul.f32 %v940, %v940
        %vm1031 = vmand %vm979, %vm998
        %vm1032 = vmand %vm980, %vm998
        %vm1033 = vmand %vm981, %vm998
        %vm1034 = vmand %vm982, %vm998
        %vm1035 = vmand %vm983, %vm998
        %vm1036 = vmand %vm984, %vm998
        %vm1037 = vmand %vm985, %vm998
        %vm1038 = vmand %vm986, %vm998
        %vm1039 = vmand %vm987, %vm998
        %vm1040 = vmand %vm988, %vm998
        %vm1041 = vmand %vm989, %vm998
        %vm1042 = vmand %vm990, %vm998
        %vm1043 = vmand %vm991, %vm998
        %vm1044 = vmand %vm992, %vm998
        %vm1045 = vmand %vm993, %vm998
        %vm1046 = vmand %vm994, %vm998
        %v1047 = vmul.f32 %v903, 2.0
        %v1048 = vmul.f32 %v905, 2.0
        %v1049 = vmul.f32 %v908, 2.0
        %v1050 = vmul.f32 %v910, 2.0
        %v1051 = vmul.f32 %v913, 2.0
        %v1052 = vmul.f32 %v915, 2.0
        %v1053 = vmul.f32 %v918, 2.0
        %v1054 = vmul.f32 %v920, 2.0
        %v1055 = vmul.f32 %v923, 2.0
        %v1056 = vmul.f32 %v925, 2.0
        %v1057 = vmul.f32 %v928, 2.0
        %v1058 = vmul.f32 %v930, 2.0
        %v1059 = vmul.f32 %v933, 2.0
        %v1060 = vmul.f32 %v935, 2.0
        %v1061 = vmul.f32 %v938, 2.0
        %v1062 = vmul.f32 %v940, 2.0
        %v1063 = vmul.f32 %v1047, 1.442695
        %v1064 = vpow.pop %v1063
        %v1065 = vmul.f32 %v1048, 1.442695
        %v1066 = vpow.pop %v1065
        %v1067 = vmul.f32 %v1049, 1.442695
        %v1068 = vpow.pop %v1067
        %v1069 = vmul.f32 %v1050, 1.442695
        %v1070 = vpow.pop %v1069
        %v1071 = vmul.f32 %v1051, 1.442695
        %v1072 = vpow.pop %v1071
        %v1073 = vmul.f32 %v1052, 1.442695
        %v1074 = vpow.pop %v1073
        %v1075 = vmul.f32 %v1053, 1.442695
        %v1076 = vpow.pop %v1075
        %v1077 = vmul.f32 %v1054, 1.442695
        %v1078 = vpow.pop %v1077
        %v1079 = vmul.f32 %v1055, 1.442695
        %v1080 = vpow.pop %v1079
        %v1081 = vmul.f32 %v1056, 1.442695
        %v1082 = vpow.pop %v1081
        %v1083 = vmul.f32 %v1057, 1.442695
        %v1084 = vpow.pop %v1083
        %v1085 = vmul.f32 %v1058, 1.442695
        %v1086 = vpow.pop %v1085
        %v1087 = vmul.f32 %v1059, 1.442695
        %v1088 = vpow.pop %v1087
        %v1089 = vmul.f32 %v1060, 1.442695
        %v1090 = vpow.pop %v1089
        %v1091 = vmul.f32 %v1061, 1.442695
        %v1092 = vpow.pop %v1091
        %v1093 = vmul.f32 %v1062, 1.442695
        %v1094 = vpow.pop %v1093
        %v1095 = vsub.f32 %v1064, %v903
        %v1096 = vsub.f32 %v1066, %v905
        %v1097 = vsub.f32 %v1068, %v908
        %v1098 = vsub.f32 %v1070, %v910
        %v1099 = vsub.f32 %v1072, %v913
        %v1100 = vsub.f32 %v1074, %v915
        %v1101 = vsub.f32 %v1076, %v918
        %v1102 = vsub.f32 %v1078, %v920
        %v1103 = vsub.f32 %v1080, %v923
        %v1104 = vsub.f32 %v1082, %v925
        %v1105 = vsub.f32 %v1084, %v928
        %v1106 = vsub.f32 %v1086, %v930
        %v1107 = vsub.f32 %v1088, %v933
        %v1108 = vsub.f32 %v1090, %v935
        %v1109 = vsub.f32 %v1092, %v938
        %v1110 = vsub.f32 %v1094, %v940
        %v1111 = vsel %vm1031, %v1095, 0.0
        %v1112 = vsel %vm1032, %v1096, 0.0
        %v1113 = vsel %vm1033, %v1097, 0.0
        %v1114 = vsel %vm1034, %v1098, 0.0
        %v1115 = vsel %vm1035, %v1099, 0.0
        %v1116 = vsel %vm1036, %v1100, 0.0
        %v1117 = vsel %vm1037, %v1101, 0.0
        %v1118 = vsel %vm1038, %v1102, 0.0
        %v1119 = vsel %vm1039, %v1103, 0.0
        %v1120 = vsel %vm1040, %v1104, 0.0
        %v1121 = vsel %vm1041, %v1105, 0.0
        %v1122 = vsel %vm1042, %v1106, 0.0
        %v1123 = vsel %vm1043, %v1107, 0.0
        %v1124 = vsel %vm1044, %v1108, 0.0
        %v1125 = vsel %vm1045, %v1109, 0.0
        %v1126 = vsel %vm1046, %v1110, 0.0
        %v1127 = vsel %vm999, %v1015, %v1111
        %v1128 = vsel %vm1000, %v1016, %v1112
        %v1129 = vsel %vm1001, %v1017, %v1113
        %v1130 = vsel %vm1002, %v1018, %v1114
        %v1131 = vsel %vm1003, %v1019, %v1115
        %v1132 = vsel %vm1004, %v1020, %v1116
        %v1133 = vsel %vm1005, %v1021, %v1117
        %v1134 = vsel %vm1006, %v1022, %v1118
        %v1135 = vsel %vm1007, %v1023, %v1119
        %v1136 = vsel %vm1008, %v1024, %v1120
        %v1137 = vsel %vm1009, %v1025, %v1121
        %v1138 = vsel %vm1010, %v1026, %v1122
        %v1139 = vsel %vm1011, %v1027, %v1123
        %v1140 = vsel %vm1012, %v1028, %v1124
        %v1141 = vsel %vm1013, %v1029, %v1125
        %v1142 = vsel %vm1014, %v1030, %v1126
        %s1143 = ssub.s32 300, %s961
        %p1144 = scmp.lt.s32.totalorder %s1143, 128
        %s1145 = scalar_select %p1144, %s1143, 128
        %s1146 = scvt.s32.f32 %s1145
        %v1147 = vadd.f32 %v1127, %v1128
        %v1148 = vadd.f32 %v1147, %v1129
        %v1149 = vadd.f32 %v1148, %v1130
        %v1150 = vadd.f32 %v1149, %v1131
        %v1151 = vadd.f32 %v1150, %v1132
        %v1152 = vadd.f32 %v1151, %v1133
        %v1153 = vadd.f32 %v1152, %v1134
        %v1154 = vadd.f32 %v1153, %v1135
        %v1155 = vadd.f32 %v1154, %v1136
        %v1156 = vadd.f32 %v1155, %v1137
        %v1157 = vadd.f32 %v1156, %v1138
        %v1158 = vadd.f32 %v1157, %v1139
        %v1159 = vadd.f32 %v1158, %v1140
        %v1160 = vadd.f32 %v1159, %v1141
        %v1161 = vadd.f32 %v1160, %v1142
        %1162 = vadd.xlane.f32.xlu0 %v1161
        %v1163 = vpop.xlane.xlu0 %1162
        %v1164 = vrot.slane %v1163, 4
        %v1165 = vadd.f32 %v1163, %v1164
        %v1166 = vrot.slane %v1165, 2
        %v1167 = vadd.f32 %v1165, %v1166
        %v1168 = vrot.slane %v1167, 1
        %v1169 = vadd.f32 %v1167, %v1168
        %s1170 = vtos %v1169
        %s1171 = smul.f32 %s1146, 10.0
        %s1172 = ssub.f32 %s1170, %s1171
        %v1173 = vstv %s1172
        %1174 = vst [vmem:[%s472] sm:$0xff] %v1173
        %v1175 = vpack.c.bf16 %v905, %v903
        %v1176 = vpack.c.bf16 %v910, %v908
        %v1177 = vpack.c.bf16 %v915, %v913
        %v1178 = vpack.c.bf16 %v920, %v918
        %v1179 = vpack.c.bf16 %v925, %v923
        %v1180 = vpack.c.bf16 %v930, %v928
        %v1181 = vpack.c.bf16 %v935, %v933
        %v1182 = vpack.c.bf16 %v940, %v938
        %v1183 = vld [vmem:[#allocation10] sm:$0xf]
        %v1184 = vld [vmem:[#allocation10 + $0x4] sm:$0xf]
        %v1185 = vld [vmem:[#allocation10 + $0x8] sm:$0xf]
        %v1186 = vld [vmem:[#allocation10 + $0xc] sm:$0xf]
        %v1187 = vld [vmem:[#allocation10 + $0x10] sm:$0xf]
        %v1188 = vld [vmem:[#allocation10 + $0x14] sm:$0xf]
        %v1189 = vld [vmem:[#allocation10 + $0x18] sm:$0xf]
        %v1190 = vld [vmem:[#allocation10 + $0x1c] sm:$0xf]
        %v1191 = vld [vmem:[#allocation10 + $0x20] sm:$0xf]
        %v1192 = vld [vmem:[#allocation10 + $0x24] sm:$0xf]
        %v1193 = vld [vmem:[#allocation10 + $0x28] sm:$0xf]
        %v1194 = vld [vmem:[#allocation10 + $0x2c] sm:$0xf]
        %v1195 = vld [vmem:[#allocation10 + $0x30] sm:$0xf]
        %v1196 = vld [vmem:[#allocation10 + $0x34] sm:$0xf]
        %v1197 = vld [vmem:[#allocation10 + $0x38] sm:$0xf]
        %v1198 = vld [vmem:[#allocation10 + $0x3c] sm:$0xf]
        %v1199 = vld [vmem:[%s6] sm:$0x1]
        %v1201 = vperm.slane %v1199, 0
        %v1219 = vunpack.c.l.b16 %v1183
        %v1220 = vunpack.c.l.b16 %v1184
        %v1221 = vunpack.c.l.b16 %v1185
        %v1222 = vunpack.c.l.b16 %v1186
        %v1223 = vunpack.c.l.b16 %v1187
        %v1224 = vunpack.c.l.b16 %v1188
        %v1225 = vunpack.c.l.b16 %v1189
        %v1226 = vunpack.c.l.b16 %v1190
        %v1227 = vunpack.c.l.b16 %v1191
        %v1228 = vunpack.c.l.b16 %v1192
        %v1229 = vunpack.c.l.b16 %v1193
        %v1230 = vunpack.c.l.b16 %v1194
        %v1231 = vunpack.c.l.b16 %v1195
        %v1232 = vunpack.c.l.b16 %v1196
        %v1233 = vunpack.c.l.b16 %v1197
        %v1234 = vunpack.c.l.b16 %v1198
        %v1235 = vpack.c.b16 %v1220, %v1219
        %v1236 = vpack.c.b16 %v1222, %v1221
        %v1237 = vpack.c.b16 %v1224, %v1223
        %v1238 = vpack.c.b16 %v1226, %v1225
        %v1239 = vpack.c.b16 %v1228, %v1227
        %v1240 = vpack.c.b16 %v1230, %v1229
        %v1241 = vpack.c.b16 %v1232, %v1231
        %v1242 = vpack.c.b16 %v1234, %v1233
        %1251 = vmatpush.bf16.msra.mxu0 %v1242
        %1252 = vmatpush.bf16.msra.mxu0 %v1241
        %1253 = vmatpush.bf16.msra.mxu0 %v1240
        %1254 = vmatpush.bf16.msra.mxu0 %v1239
        %1255 = vmatpush.bf16.msra.mxu0 %v1238
        %1256 = vmatpush.bf16.msra.mxu0 %v1237
        %1257 = vmatpush.bf16.msra.mxu0 %v1236
        %1258 = vmatpush.bf16.msra.mxu0 %v1235
        %1259 = vmatmul.bf16.gmra.mxu0 %v1175
        %v1260 = vpop.f32.mrf.mxu0
        %v1261 = vadd.f32 %v1201, %v1260
        %v1262 = vpop.f32.mrf.mxu0
        %v1263 = vadd.f32 %v1201, %v1262
        %1264 = vmatmul.bf16.gmra.mxu0 %v1176
        %v1265 = vpop.f32.mrf.mxu0
        %v1266 = vadd.f32 %v1201, %v1265
        %v1267 = vpop.f32.mrf.mxu0
        %v1268 = vadd.f32 %v1201, %v1267
        %1269 = vmatmul.bf16.gmra.mxu0 %v1177
        %v1270 = vpop.f32.mrf.mxu0
        %v1271 = vadd.f32 %v1201, %v1270
        %v1272 = vpop.f32.mrf.mxu0
        %v1273 = vadd.f32 %v1201, %v1272
        %1274 = vmatmul.bf16.gmra.mxu0 %v1178
        %v1275 = vpop.f32.mrf.mxu0
        %v1276 = vadd.f32 %v1201, %v1275
        %v1277 = vpop.f32.mrf.mxu0
        %v1278 = vadd.f32 %v1201, %v1277
        %1279 = vmatmul.bf16.gmra.mxu0 %v1179
        %v1280 = vpop.f32.mrf.mxu0
        %v1281 = vadd.f32 %v1201, %v1280
        %v1282 = vpop.f32.mrf.mxu0
        %v1283 = vadd.f32 %v1201, %v1282
        %1284 = vmatmul.bf16.gmra.mxu0 %v1180
        %v1285 = vpop.f32.mrf.mxu0
        %v1286 = vadd.f32 %v1201, %v1285
        %v1287 = vpop.f32.mrf.mxu0
        %v1288 = vadd.f32 %v1201, %v1287
        %1289 = vmatmul.bf16.gmra.mxu0 %v1181
        %v1290 = vpop.f32.mrf.mxu0
        %v1291 = vadd.f32 %v1201, %v1290
        %v1292 = vpop.f32.mrf.mxu0
        %v1293 = vadd.f32 %v1201, %v1292
        %1294 = vmatmul.bf16.gmra.mxu0 %v1182
        %v1295 = vpop.f32.mrf.mxu0
        %v1296 = vadd.f32 %v1201, %v1295
        %v1297 = vpop.f32.mrf.mxu0
        %v1298 = vadd.f32 %v1201, %v1297
        %1299 = vdwg.mxu0
        %v1300 = vmax.f32 %v1261, 0.0
        %v1301 = vmax.f32 %v1263, 0.0
        %v1302 = vmax.f32 %v1266, 0.0
        %v1303 = vmax.f32 %v1268, 0.0
        %v1304 = vmax.f32 %v1271, 0.0
        %v1305 = vmax.f32 %v1273, 0.0
        %v1306 = vmax.f32 %v1276, 0.0
        %v1307 = vmax.f32 %v1278, 0.0
        %v1308 = vmax.f32 %v1281, 0.0
        %v1309 = vmax.f32 %v1283, 0.0
        %v1310 = vmax.f32 %v1286, 0.0
        %v1311 = vmax.f32 %v1288, 0.0
        %v1312 = vmax.f32 %v1291, 0.0
        %v1313 = vmax.f32 %v1293, 0.0
        %v1314 = vmax.f32 %v1296, 0.0
        %v1315 = vmax.f32 %v1298, 0.0
        %v1316 = vpack.c.bf16 %v1301, %v1300
        %v1317 = vpack.c.bf16 %v1303, %v1302
        %v1318 = vpack.c.bf16 %v1305, %v1304
        %v1319 = vpack.c.bf16 %v1307, %v1306
        %v1320 = vpack.c.bf16 %v1309, %v1308
        %v1321 = vpack.c.bf16 %v1311, %v1310
        %v1322 = vpack.c.bf16 %v1313, %v1312
        %v1323 = vpack.c.bf16 %v1315, %v1314
        %v1324 = vld [vmem:[#allocation11] sm:$0xff]
        %v1325 = vld [vmem:[#allocation11 + $0x8] sm:$0xff]
        %v1326 = vld [vmem:[#allocation11 + $0x10] sm:$0xff]
        %v1327 = vld [vmem:[#allocation11 + $0x18] sm:$0xff]
        %v1328 = vld [vmem:[#allocation11 + $0x20] sm:$0xff]
        %v1329 = vld [vmem:[#allocation11 + $0x28] sm:$0xff]
        %v1330 = vld [vmem:[#allocation11 + $0x30] sm:$0xff]
        %v1331 = vld [vmem:[#allocation11 + $0x38] sm:$0xff]
        %v1332 = vld [vmem:[#allocation11 + $0x40] sm:$0xff]
        %v1333 = vld [vmem:[#allocation11 + $0x48] sm:$0xff]
        %v1334 = vld [vmem:[#allocation11 + $0x50] sm:$0xff]
        %v1335 = vld [vmem:[#allocation11 + $0x58] sm:$0xff]
        %v1336 = vld [vmem:[#allocation11 + $0x60] sm:$0xff]
        %v1337 = vld [vmem:[#allocation11 + $0x68] sm:$0xff]
        %v1338 = vld [vmem:[#allocation11 + $0x70] sm:$0xff]
        %v1339 = vld [vmem:[#allocation11 + $0x78] sm:$0xff]
        %v1340 = vld [vmem:[%s8] sm:$0x3]
        %v1342 = vperm.slane %v1340, 0
        %v1343 = vperm.slane %v1340, 1
        %v1362 = vunpack.c.l.b16 %v1324
        %v1363 = vunpack.c.h.b16 %v1324
        %v1364 = vunpack.c.l.b16 %v1325
        %v1365 = vunpack.c.h.b16 %v1325
        %v1366 = vunpack.c.l.b16 %v1326
        %v1367 = vunpack.c.h.b16 %v1326
        %v1368 = vunpack.c.l.b16 %v1327
        %v1369 = vunpack.c.h.b16 %v1327
        %v1370 = vunpack.c.l.b16 %v1328
        %v1371 = vunpack.c.h.b16 %v1328
        %v1372 = vunpack.c.l.b16 %v1329
        %v1373 = vunpack.c.h.b16 %v1329
        %v1374 = vunpack.c.l.b16 %v1330
        %v1375 = vunpack.c.h.b16 %v1330
        %v1376 = vunpack.c.l.b16 %v1331
        %v1377 = vunpack.c.h.b16 %v1331
        %v1378 = vunpack.c.l.b16 %v1332
        %v1379 = vunpack.c.h.b16 %v1332
        %v1380 = vunpack.c.l.b16 %v1333
        %v1381 = vunpack.c.h.b16 %v1333
        %v1382 = vunpack.c.l.b16 %v1334
        %v1383 = vunpack.c.h.b16 %v1334
        %v1384 = vunpack.c.l.b16 %v1335
        %v1385 = vunpack.c.h.b16 %v1335
        %v1386 = vunpack.c.l.b16 %v1336
        %v1387 = vunpack.c.h.b16 %v1336
        %v1388 = vunpack.c.l.b16 %v1337
        %v1389 = vunpack.c.h.b16 %v1337
        %v1390 = vunpack.c.l.b16 %v1338
        %v1391 = vunpack.c.h.b16 %v1338
        %v1392 = vunpack.c.l.b16 %v1339
        %v1393 = vunpack.c.h.b16 %v1339
        %v1394 = vpack.c.b16 %v1364, %v1362
        %v1395 = vpack.c.b16 %v1365, %v1363
        %v1396 = vpack.c.b16 %v1368, %v1366
        %v1397 = vpack.c.b16 %v1369, %v1367
        %v1398 = vpack.c.b16 %v1372, %v1370
        %v1399 = vpack.c.b16 %v1373, %v1371
        %v1400 = vpack.c.b16 %v1376, %v1374
        %v1401 = vpack.c.b16 %v1377, %v1375
        %v1402 = vpack.c.b16 %v1380, %v1378
        %v1403 = vpack.c.b16 %v1381, %v1379
        %v1404 = vpack.c.b16 %v1384, %v1382
        %v1405 = vpack.c.b16 %v1385, %v1383
        %v1406 = vpack.c.b16 %v1388, %v1386
        %v1407 = vpack.c.b16 %v1389, %v1387
        %v1408 = vpack.c.b16 %v1392, %v1390
        %v1409 = vpack.c.b16 %v1393, %v1391
        %1426 = vmatpush.bf16.msra.mxu0 %v1408
        %1427 = vmatpush.bf16.msra.mxu0 %v1406
        %1428 = vmatpush.bf16.msra.mxu0 %v1404
        %1429 = vmatpush.bf16.msra.mxu0 %v1402
        %1430 = vmatpush.bf16.msra.mxu0 %v1400
        %1431 = vmatpush.bf16.msra.mxu0 %v1398
        %1432 = vmatpush.bf16.msra.mxu0 %v1396
        %1433 = vmatpush.bf16.msra.mxu0 %v1394
        %1434 = vmatmul.bf16.gmra.mxu0 %v1316
        %v1435 = vpop.f32.mrf.mxu0
        %v1436 = vadd.f32 %v1342, %v1435
        %v1437 = vpop.f32.mrf.mxu0
        %v1438 = vadd.f32 %v1342, %v1437
        %1439 = vmatmul.bf16.gmra.mxu0 %v1317
        %v1440 = vpop.f32.mrf.mxu0
        %v1441 = vadd.f32 %v1342, %v1440
        %v1442 = vpop.f32.mrf.mxu0
        %v1443 = vadd.f32 %v1342, %v1442
        %1444 = vmatmul.bf16.gmra.mxu0 %v1318
        %v1445 = vpop.f32.mrf.mxu0
        %v1446 = vadd.f32 %v1342, %v1445
        %v1447 = vpop.f32.mrf.mxu0
        %v1448 = vadd.f32 %v1342, %v1447
        %1449 = vmatmul.bf16.gmra.mxu0 %v1319
        %v1450 = vpop.f32.mrf.mxu0
        %v1451 = vadd.f32 %v1342, %v1450
        %v1452 = vpop.f32.mrf.mxu0
        %v1453 = vadd.f32 %v1342, %v1452
        %1454 = vmatmul.bf16.gmra.mxu0 %v1320
        %v1455 = vpop.f32.mrf.mxu0
        %v1456 = vadd.f32 %v1342, %v1455
        %v1457 = vpop.f32.mrf.mxu0
        %v1458 = vadd.f32 %v1342, %v1457
        %1459 = vmatmul.bf16.gmra.mxu0 %v1321
        %v1460 = vpop.f32.mrf.mxu0
        %v1461 = vadd.f32 %v1342, %v1460
        %v1462 = vpop.f32.mrf.mxu0
        %v1463 = vadd.f32 %v1342, %v1462
        %1464 = vmatmul.bf16.gmra.mxu0 %v1322
        %v1465 = vpop.f32.mrf.mxu0
        %v1466 = vadd.f32 %v1342, %v1465
        %v1467 = vpop.f32.mrf.mxu0
        %v1468 = vadd.f32 %v1342, %v1467
        %1469 = vmatmul.bf16.gmra.mxu0 %v1323
        %v1470 = vpop.f32.mrf.mxu0
        %v1471 = vadd.f32 %v1342, %v1470
        %v1472 = vpop.f32.mrf.mxu0
        %v1473 = vadd.f32 %v1342, %v1472
        %1474 = vdwg.mxu0
        %1475 = vmatpush.bf16.msra.mxu0 %v1409
        %1476 = vmatpush.bf16.msra.mxu0 %v1407
        %1477 = vmatpush.bf16.msra.mxu0 %v1405
        %1478 = vmatpush.bf16.msra.mxu0 %v1403
        %1479 = vmatpush.bf16.msra.mxu0 %v1401
        %1480 = vmatpush.bf16.msra.mxu0 %v1399
        %1481 = vmatpush.bf16.msra.mxu0 %v1397
        %1482 = vmatpush.bf16.msra.mxu0 %v1395
        %1483 = vmatmul.bf16.gmra.mxu0 %v1316
        %v1484 = vpop.f32.mrf.mxu0
        %v1485 = vadd.f32 %v1343, %v1484
        %v1486 = vpop.f32.mrf.mxu0
        %v1487 = vadd.f32 %v1343, %v1486
        %1488 = vmatmul.bf16.gmra.mxu0 %v1317
        %v1489 = vpop.f32.mrf.mxu0
        %v1490 = vadd.f32 %v1343, %v1489
        %v1491 = vpop.f32.mrf.mxu0
        %v1492 = vadd.f32 %v1343, %v1491
        %1493 = vmatmul.bf16.gmra.mxu0 %v1318
        %v1494 = vpop.f32.mrf.mxu0
        %v1495 = vadd.f32 %v1343, %v1494
        %v1496 = vpop.f32.mrf.mxu0
        %v1497 = vadd.f32 %v1343, %v1496
        %1498 = vmatmul.bf16.gmra.mxu0 %v1319
        %v1499 = vpop.f32.mrf.mxu0
        %v1500 = vadd.f32 %v1343, %v1499
        %v1501 = vpop.f32.mrf.mxu0
        %v1502 = vadd.f32 %v1343, %v1501
        %1503 = vmatmul.bf16.gmra.mxu0 %v1320
        %v1504 = vpop.f32.mrf.mxu0
        %v1505 = vadd.f32 %v1343, %v1504
        %v1506 = vpop.f32.mrf.mxu0
        %v1507 = vadd.f32 %v1343, %v1506
        %1508 = vmatmul.bf16.gmra.mxu0 %v1321
        %v1509 = vpop.f32.mrf.mxu0
        %v1510 = vadd.f32 %v1343, %v1509
        %v1511 = vpop.f32.mrf.mxu0
        %v1512 = vadd.f32 %v1343, %v1511
        %1513 = vmatmul.bf16.gmra.mxu0 %v1322
        %v1514 = vpop.f32.mrf.mxu0
        %v1515 = vadd.f32 %v1343, %v1514
        %v1516 = vpop.f32.mrf.mxu0
        %v1517 = vadd.f32 %v1343, %v1516
        %1518 = vmatmul.bf16.gmra.mxu0 %v1323
        %v1519 = vpop.f32.mrf.mxu0
        %v1520 = vadd.f32 %v1343, %v1519
        %v1521 = vpop.f32.mrf.mxu0
        %v1522 = vadd.f32 %v1343, %v1521
        %1523 = vdwg.mxu0
        %v1524 = vxor.u32 %v1436, 2147483648
        %v1525 = vxor.u32 %v1485, 2147483648
        %v1526 = vxor.u32 %v1438, 2147483648
        %v1527 = vxor.u32 %v1487, 2147483648
        %v1528 = vxor.u32 %v1441, 2147483648
        %v1529 = vxor.u32 %v1490, 2147483648
        %v1530 = vxor.u32 %v1443, 2147483648
        %v1531 = vxor.u32 %v1492, 2147483648
        %v1532 = vxor.u32 %v1446, 2147483648
        %v1533 = vxor.u32 %v1495, 2147483648
        %v1534 = vxor.u32 %v1448, 2147483648
        %v1535 = vxor.u32 %v1497, 2147483648
        %v1536 = vxor.u32 %v1451, 2147483648
        %v1537 = vxor.u32 %v1500, 2147483648
        %v1538 = vxor.u32 %v1453, 2147483648
        %v1539 = vxor.u32 %v1502, 2147483648
        %v1540 = vxor.u32 %v1456, 2147483648
        %v1541 = vxor.u32 %v1505, 2147483648
        %v1542 = vxor.u32 %v1458, 2147483648
        %v1543 = vxor.u32 %v1507, 2147483648
        %v1544 = vxor.u32 %v1461, 2147483648
        %v1545 = vxor.u32 %v1510, 2147483648
        %v1546 = vxor.u32 %v1463, 2147483648
        %v1547 = vxor.u32 %v1512, 2147483648
        %v1548 = vxor.u32 %v1466, 2147483648
        %v1549 = vxor.u32 %v1515, 2147483648
        %v1550 = vxor.u32 %v1468, 2147483648
        %v1551 = vxor.u32 %v1517, 2147483648
        %v1552 = vxor.u32 %v1471, 2147483648
        %v1553 = vxor.u32 %v1520, 2147483648
        %v1554 = vxor.u32 %v1473, 2147483648
        %v1555 = vxor.u32 %v1522, 2147483648
        %v1556 = vmul.f32 %v1524, 1.442695
        %v1557 = vpow.pop %v1556
        %v1558 = vmul.f32 %v1525, 1.442695
        %v1559 = vpow.pop %v1558
        %v1560 = vmul.f32 %v1526, 1.442695
        %v1561 = vpow.pop %v1560
        %v1562 = vmul.f32 %v1527, 1.442695
        %v1563 = vpow.pop %v1562
        %v1564 = vmul.f32 %v1528, 1.442695
        %v1565 = vpow.pop %v1564
        %v1566 = vmul.f32 %v1529, 1.442695
        %v1567 = vpow.pop %v1566
        %v1568 = vmul.f32 %v1530, 1.442695
        %v1569 = vpow.pop %v1568
        %v1570 = vmul.f32 %v1531, 1.442695
        %v1571 = vpow.pop %v1570
        %v1572 = vmul.f32 %v1532, 1.442695
        %v1573 = vpow.pop %v1572
        %v1574 = vmul.f32 %v1533, 1.442695
        %v1575 = vpow.pop %v1574
        %v1576 = vmul.f32 %v1534, 1.442695
        %v1577 = vpow.pop %v1576
        %v1578 = vmul.f32 %v1535, 1.442695
        %v1579 = vpow.pop %v1578
        %v1580 = vmul.f32 %v1536, 1.442695
        %v1581 = vpow.pop %v1580
        %v1582 = vmul.f32 %v1537, 1.442695
        %v1583 = vpow.pop %v1582
        %v1584 = vmul.f32 %v1538, 1.442695
        %v1585 = vpow.pop %v1584
        %v1586 = vmul.f32 %v1539, 1.442695
        %v1587 = vpow.pop %v1586
        %v1588 = vmul.f32 %v1540, 1.442695
        %v1589 = vpow.pop %v1588
        %v1590 = vmul.f32 %v1541, 1.442695
        %v1591 = vpow.pop %v1590
        %v1592 = vmul.f32 %v1542, 1.442695
        %v1593 = vpow.pop %v1592
        %v1594 = vmul.f32 %v1543, 1.442695
        %v1595 = vpow.pop %v1594
        %v1596 = vmul.f32 %v1544, 1.442695
        %v1597 = vpow.pop %v1596
        %v1598 = vmul.f32 %v1545, 1.442695
        %v1599 = vpow.pop %v1598
        %v1600 = vmul.f32 %v1546, 1.442695
        %v1601 = vpow.pop %v1600
        %v1602 = vmul.f32 %v1547, 1.442695
        %v1603 = vpow.pop %v1602
        %v1604 = vmul.f32 %v1548, 1.442695
        %v1605 = vpow.pop %v1604
        %v1606 = vmul.f32 %v1549, 1.442695
        %v1607 = vpow.pop %v1606
        %v1608 = vmul.f32 %v1550, 1.442695
        %v1609 = vpow.pop %v1608
        %v1610 = vmul.f32 %v1551, 1.442695
        %v1611 = vpow.pop %v1610
        %v1612 = vmul.f32 %v1552, 1.442695
        %v1613 = vpow.pop %v1612
        %v1614 = vmul.f32 %v1553, 1.442695
        %v1615 = vpow.pop %v1614
        %v1616 = vmul.f32 %v1554, 1.442695
        %v1617 = vpow.pop %v1616
        %v1618 = vmul.f32 %v1555, 1.442695
        %v1619 = vpow.pop %v1618
        %v1620 = vadd.f32 %v1557, 1.0
        %v1621 = vadd.f32 %v1559, 1.0
        %v1622 = vadd.f32 %v1561, 1.0
        %v1623 = vadd.f32 %v1563, 1.0
        %v1624 = vadd.f32 %v1565, 1.0
        %v1625 = vadd.f32 %v1567, 1.0
        %v1626 = vadd.f32 %v1569, 1.0
        %v1627 = vadd.f32 %v1571, 1.0
        %v1628 = vadd.f32 %v1573, 1.0
        %v1629 = vadd.f32 %v1575, 1.0
        %v1630 = vadd.f32 %v1577, 1.0
        %v1631 = vadd.f32 %v1579, 1.0
        %v1632 = vadd.f32 %v1581, 1.0
        %v1633 = vadd.f32 %v1583, 1.0
        %v1634 = vadd.f32 %v1585, 1.0
        %v1635 = vadd.f32 %v1587, 1.0
        %v1636 = vadd.f32 %v1589, 1.0
        %v1637 = vadd.f32 %v1591, 1.0
        %v1638 = vadd.f32 %v1593, 1.0
        %v1639 = vadd.f32 %v1595, 1.0
        %v1640 = vadd.f32 %v1597, 1.0
        %v1641 = vadd.f32 %v1599, 1.0
        %v1642 = vadd.f32 %v1601, 1.0
        %v1643 = vadd.f32 %v1603, 1.0
        %v1644 = vadd.f32 %v1605, 1.0
        %v1645 = vadd.f32 %v1607, 1.0
        %v1646 = vadd.f32 %v1609, 1.0
        %v1647 = vadd.f32 %v1611, 1.0
        %v1648 = vadd.f32 %v1613, 1.0
        %v1649 = vadd.f32 %v1615, 1.0
        %v1650 = vadd.f32 %v1617, 1.0
        %v1651 = vadd.f32 %v1619, 1.0
        %v1652 = vrcp.pop %v1620
        %v1653 = vmul.f32 %v1620, %v1652
        %v1654 = vsub.f32 1.0, %v1653
        %v1655 = vmul.f32 %v1652, %v1654
        %v1656 = vadd.f32 %v1652, %v1655
        %vm1657 = vweird.f32 %v1620
        %vm1658 = vweird.f32 %v1652
        %vm1659 = vmor %vm1657, %vm1658
        %v1660 = vsel %vm1659, %v1652, %v1656
        %v1661 = vand.u32 2147483647, %v1620
        %vm1662 = vcmp.eq.f32.partialorder %v1661, 8.507059e+37
        %v1663 = vand.u32 %v1620, 2147483648
        %v1664 = vor.u32 1.1754944e-38, %v1663
        %v1665 = vsel %vm1662, %v1664, %v1660
        %v1666 = vmul.f32 1.0, %v1665
        %v1667 = vrcp.pop %v1621
        %v1668 = vmul.f32 %v1621, %v1667
        %v1669 = vsub.f32 1.0, %v1668
        %v1670 = vmul.f32 %v1667, %v1669
        %v1671 = vadd.f32 %v1667, %v1670
        %vm1672 = vweird.f32 %v1621
        %vm1673 = vweird.f32 %v1667
        %vm1674 = vmor %vm1672, %vm1673
        %v1675 = vsel %vm1674, %v1667, %v1671
        %v1676 = vand.u32 2147483647, %v1621
        %vm1677 = vcmp.eq.f32.partialorder %v1676, 8.507059e+37
        %v1678 = vand.u32 %v1621, 2147483648
        %v1679 = vor.u32 1.1754944e-38, %v1678
        %v1680 = vsel %vm1677, %v1679, %v1675
        %v1681 = vmul.f32 1.0, %v1680
        %v1682 = vrcp.pop %v1622
        %v1683 = vmul.f32 %v1622, %v1682
        %v1684 = vsub.f32 1.0, %v1683
        %v1685 = vmul.f32 %v1682, %v1684
        %v1686 = vadd.f32 %v1682, %v1685
        %vm1687 = vweird.f32 %v1622
        %vm1688 = vweird.f32 %v1682
        %vm1689 = vmor %vm1687, %vm1688
        %v1690 = vsel %vm1689, %v1682, %v1686
        %v1691 = vand.u32 2147483647, %v1622
        %vm1692 = vcmp.eq.f32.partialorder %v1691, 8.507059e+37
        %v1693 = vand.u32 %v1622, 2147483648
        %v1694 = vor.u32 1.1754944e-38, %v1693
        %v1695 = vsel %vm1692, %v1694, %v1690
        %v1696 = vmul.f32 1.0, %v1695
        %v1697 = vrcp.pop %v1623
        %v1698 = vmul.f32 %v1623, %v1697
        %v1699 = vsub.f32 1.0, %v1698
        %v1700 = vmul.f32 %v1697, %v1699
        %v1701 = vadd.f32 %v1697, %v1700
        %vm1702 = vweird.f32 %v1623
        %vm1703 = vweird.f32 %v1697
        %vm1704 = vmor %vm1702, %vm1703
        %v1705 = vsel %vm1704, %v1697, %v1701
        %v1706 = vand.u32 2147483647, %v1623
        %vm1707 = vcmp.eq.f32.partialorder %v1706, 8.507059e+37
        %v1708 = vand.u32 %v1623, 2147483648
        %v1709 = vor.u32 1.1754944e-38, %v1708
        %v1710 = vsel %vm1707, %v1709, %v1705
        %v1711 = vmul.f32 1.0, %v1710
        %v1712 = vrcp.pop %v1624
        %v1713 = vmul.f32 %v1624, %v1712
        %v1714 = vsub.f32 1.0, %v1713
        %v1715 = vmul.f32 %v1712, %v1714
        %v1716 = vadd.f32 %v1712, %v1715
        %vm1717 = vweird.f32 %v1624
        %vm1718 = vweird.f32 %v1712
        %vm1719 = vmor %vm1717, %vm1718
        %v1720 = vsel %vm1719, %v1712, %v1716
        %v1721 = vand.u32 2147483647, %v1624
        %vm1722 = vcmp.eq.f32.partialorder %v1721, 8.507059e+37
        %v1723 = vand.u32 %v1624, 2147483648
        %v1724 = vor.u32 1.1754944e-38, %v1723
        %v1725 = vsel %vm1722, %v1724, %v1720
        %v1726 = vmul.f32 1.0, %v1725
        %v1727 = vrcp.pop %v1625
        %v1728 = vmul.f32 %v1625, %v1727
        %v1729 = vsub.f32 1.0, %v1728
        %v1730 = vmul.f32 %v1727, %v1729
        %v1731 = vadd.f32 %v1727, %v1730
        %vm1732 = vweird.f32 %v1625
        %vm1733 = vweird.f32 %v1727
        %vm1734 = vmor %vm1732, %vm1733
        %v1735 = vsel %vm1734, %v1727, %v1731
        %v1736 = vand.u32 2147483647, %v1625
        %vm1737 = vcmp.eq.f32.partialorder %v1736, 8.507059e+37
        %v1738 = vand.u32 %v1625, 2147483648
        %v1739 = vor.u32 1.1754944e-38, %v1738
        %v1740 = vsel %vm1737, %v1739, %v1735
        %v1741 = vmul.f32 1.0, %v1740
        %v1742 = vrcp.pop %v1626
        %v1743 = vmul.f32 %v1626, %v1742
        %v1744 = vsub.f32 1.0, %v1743
        %v1745 = vmul.f32 %v1742, %v1744
        %v1746 = vadd.f32 %v1742, %v1745
        %vm1747 = vweird.f32 %v1626
        %vm1748 = vweird.f32 %v1742
        %vm1749 = vmor %vm1747, %vm1748
        %v1750 = vsel %vm1749, %v1742, %v1746
        %v1751 = vand.u32 2147483647, %v1626
        %vm1752 = vcmp.eq.f32.partialorder %v1751, 8.507059e+37
        %v1753 = vand.u32 %v1626, 2147483648
        %v1754 = vor.u32 1.1754944e-38, %v1753
        %v1755 = vsel %vm1752, %v1754, %v1750
        %v1756 = vmul.f32 1.0, %v1755
        %v1757 = vrcp.pop %v1627
        %v1758 = vmul.f32 %v1627, %v1757
        %v1759 = vsub.f32 1.0, %v1758
        %v1760 = vmul.f32 %v1757, %v1759
        %v1761 = vadd.f32 %v1757, %v1760
        %vm1762 = vweird.f32 %v1627
        %vm1763 = vweird.f32 %v1757
        %vm1764 = vmor %vm1762, %vm1763
        %v1765 = vsel %vm1764, %v1757, %v1761
        %v1766 = vand.u32 2147483647, %v1627
        %vm1767 = vcmp.eq.f32.partialorder %v1766, 8.507059e+37
        %v1768 = vand.u32 %v1627, 2147483648
        %v1769 = vor.u32 1.1754944e-38, %v1768
        %v1770 = vsel %vm1767, %v1769, %v1765
        %v1771 = vmul.f32 1.0, %v1770
        %v1772 = vrcp.pop %v1628
        %v1773 = vmul.f32 %v1628, %v1772
        %v1774 = vsub.f32 1.0, %v1773
        %v1775 = vmul.f32 %v1772, %v1774
        %v1776 = vadd.f32 %v1772, %v1775
        %vm1777 = vweird.f32 %v1628
        %vm1778 = vweird.f32 %v1772
        %vm1779 = vmor %vm1777, %vm1778
        %v1780 = vsel %vm1779, %v1772, %v1776
        %v1781 = vand.u32 2147483647, %v1628
        %vm1782 = vcmp.eq.f32.partialorder %v1781, 8.507059e+37
        %v1783 = vand.u32 %v1628, 2147483648
        %v1784 = vor.u32 1.1754944e-38, %v1783
        %v1785 = vsel %vm1782, %v1784, %v1780
        %v1786 = vmul.f32 1.0, %v1785
        %v1787 = vrcp.pop %v1629
        %v1788 = vmul.f32 %v1629, %v1787
        %v1789 = vsub.f32 1.0, %v1788
        %v1790 = vmul.f32 %v1787, %v1789
        %v1791 = vadd.f32 %v1787, %v1790
        %vm1792 = vweird.f32 %v1629
        %vm1793 = vweird.f32 %v1787
        %vm1794 = vmor %vm1792, %vm1793
        %v1795 = vsel %vm1794, %v1787, %v1791
        %v1796 = vand.u32 2147483647, %v1629
        %vm1797 = vcmp.eq.f32.partialorder %v1796, 8.507059e+37
        %v1798 = vand.u32 %v1629, 2147483648
        %v1799 = vor.u32 1.1754944e-38, %v1798
        %v1800 = vsel %vm1797, %v1799, %v1795
        %v1801 = vmul.f32 1.0, %v1800
        %v1802 = vrcp.pop %v1630
        %v1803 = vmul.f32 %v1630, %v1802
        %v1804 = vsub.f32 1.0, %v1803
        %v1805 = vmul.f32 %v1802, %v1804
        %v1806 = vadd.f32 %v1802, %v1805
        %vm1807 = vweird.f32 %v1630
        %vm1808 = vweird.f32 %v1802
        %vm1809 = vmor %vm1807, %vm1808
        %v1810 = vsel %vm1809, %v1802, %v1806
        %v1811 = vand.u32 2147483647, %v1630
        %vm1812 = vcmp.eq.f32.partialorder %v1811, 8.507059e+37
        %v1813 = vand.u32 %v1630, 2147483648
        %v1814 = vor.u32 1.1754944e-38, %v1813
        %v1815 = vsel %vm1812, %v1814, %v1810
        %v1816 = vmul.f32 1.0, %v1815
        %v1817 = vrcp.pop %v1631
        %v1818 = vmul.f32 %v1631, %v1817
        %v1819 = vsub.f32 1.0, %v1818
        %v1820 = vmul.f32 %v1817, %v1819
        %v1821 = vadd.f32 %v1817, %v1820
        %vm1822 = vweird.f32 %v1631
        %vm1823 = vweird.f32 %v1817
        %vm1824 = vmor %vm1822, %vm1823
        %v1825 = vsel %vm1824, %v1817, %v1821
        %v1826 = vand.u32 2147483647, %v1631
        %vm1827 = vcmp.eq.f32.partialorder %v1826, 8.507059e+37
        %v1828 = vand.u32 %v1631, 2147483648
        %v1829 = vor.u32 1.1754944e-38, %v1828
        %v1830 = vsel %vm1827, %v1829, %v1825
        %v1831 = vmul.f32 1.0, %v1830
        %v1832 = vrcp.pop %v1632
        %v1833 = vmul.f32 %v1632, %v1832
        %v1834 = vsub.f32 1.0, %v1833
        %v1835 = vmul.f32 %v1832, %v1834
        %v1836 = vadd.f32 %v1832, %v1835
        %vm1837 = vweird.f32 %v1632
        %vm1838 = vweird.f32 %v1832
        %vm1839 = vmor %vm1837, %vm1838
        %v1840 = vsel %vm1839, %v1832, %v1836
        %v1841 = vand.u32 2147483647, %v1632
        %vm1842 = vcmp.eq.f32.partialorder %v1841, 8.507059e+37
        %v1843 = vand.u32 %v1632, 2147483648
        %v1844 = vor.u32 1.1754944e-38, %v1843
        %v1845 = vsel %vm1842, %v1844, %v1840
        %v1846 = vmul.f32 1.0, %v1845
        %v1847 = vrcp.pop %v1633
        %v1848 = vmul.f32 %v1633, %v1847
        %v1849 = vsub.f32 1.0, %v1848
        %v1850 = vmul.f32 %v1847, %v1849
        %v1851 = vadd.f32 %v1847, %v1850
        %vm1852 = vweird.f32 %v1633
        %vm1853 = vweird.f32 %v1847
        %vm1854 = vmor %vm1852, %vm1853
        %v1855 = vsel %vm1854, %v1847, %v1851
        %v1856 = vand.u32 2147483647, %v1633
        %vm1857 = vcmp.eq.f32.partialorder %v1856, 8.507059e+37
        %v1858 = vand.u32 %v1633, 2147483648
        %v1859 = vor.u32 1.1754944e-38, %v1858
        %v1860 = vsel %vm1857, %v1859, %v1855
        %v1861 = vmul.f32 1.0, %v1860
        %v1862 = vrcp.pop %v1634
        %v1863 = vmul.f32 %v1634, %v1862
        %v1864 = vsub.f32 1.0, %v1863
        %v1865 = vmul.f32 %v1862, %v1864
        %v1866 = vadd.f32 %v1862, %v1865
        %vm1867 = vweird.f32 %v1634
        %vm1868 = vweird.f32 %v1862
        %vm1869 = vmor %vm1867, %vm1868
        %v1870 = vsel %vm1869, %v1862, %v1866
        %v1871 = vand.u32 2147483647, %v1634
        %vm1872 = vcmp.eq.f32.partialorder %v1871, 8.507059e+37
        %v1873 = vand.u32 %v1634, 2147483648
        %v1874 = vor.u32 1.1754944e-38, %v1873
        %v1875 = vsel %vm1872, %v1874, %v1870
        %v1876 = vmul.f32 1.0, %v1875
        %v1877 = vrcp.pop %v1635
        %v1878 = vmul.f32 %v1635, %v1877
        %v1879 = vsub.f32 1.0, %v1878
        %v1880 = vmul.f32 %v1877, %v1879
        %v1881 = vadd.f32 %v1877, %v1880
        %vm1882 = vweird.f32 %v1635
        %vm1883 = vweird.f32 %v1877
        %vm1884 = vmor %vm1882, %vm1883
        %v1885 = vsel %vm1884, %v1877, %v1881
        %v1886 = vand.u32 2147483647, %v1635
        %vm1887 = vcmp.eq.f32.partialorder %v1886, 8.507059e+37
        %v1888 = vand.u32 %v1635, 2147483648
        %v1889 = vor.u32 1.1754944e-38, %v1888
        %v1890 = vsel %vm1887, %v1889, %v1885
        %v1891 = vmul.f32 1.0, %v1890
        %v1892 = vrcp.pop %v1636
        %v1893 = vmul.f32 %v1636, %v1892
        %v1894 = vsub.f32 1.0, %v1893
        %v1895 = vmul.f32 %v1892, %v1894
        %v1896 = vadd.f32 %v1892, %v1895
        %vm1897 = vweird.f32 %v1636
        %vm1898 = vweird.f32 %v1892
        %vm1899 = vmor %vm1897, %vm1898
        %v1900 = vsel %vm1899, %v1892, %v1896
        %v1901 = vand.u32 2147483647, %v1636
        %vm1902 = vcmp.eq.f32.partialorder %v1901, 8.507059e+37
        %v1903 = vand.u32 %v1636, 2147483648
        %v1904 = vor.u32 1.1754944e-38, %v1903
        %v1905 = vsel %vm1902, %v1904, %v1900
        %v1906 = vmul.f32 1.0, %v1905
        %v1907 = vrcp.pop %v1637
        %v1908 = vmul.f32 %v1637, %v1907
        %v1909 = vsub.f32 1.0, %v1908
        %v1910 = vmul.f32 %v1907, %v1909
        %v1911 = vadd.f32 %v1907, %v1910
        %vm1912 = vweird.f32 %v1637
        %vm1913 = vweird.f32 %v1907
        %vm1914 = vmor %vm1912, %vm1913
        %v1915 = vsel %vm1914, %v1907, %v1911
        %v1916 = vand.u32 2147483647, %v1637
        %vm1917 = vcmp.eq.f32.partialorder %v1916, 8.507059e+37
        %v1918 = vand.u32 %v1637, 2147483648
        %v1919 = vor.u32 1.1754944e-38, %v1918
        %v1920 = vsel %vm1917, %v1919, %v1915
        %v1921 = vmul.f32 1.0, %v1920
        %v1922 = vrcp.pop %v1638
        %v1923 = vmul.f32 %v1638, %v1922
        %v1924 = vsub.f32 1.0, %v1923
        %v1925 = vmul.f32 %v1922, %v1924
        %v1926 = vadd.f32 %v1922, %v1925
        %vm1927 = vweird.f32 %v1638
        %vm1928 = vweird.f32 %v1922
        %vm1929 = vmor %vm1927, %vm1928
        %v1930 = vsel %vm1929, %v1922, %v1926
        %v1931 = vand.u32 2147483647, %v1638
        %vm1932 = vcmp.eq.f32.partialorder %v1931, 8.507059e+37
        %v1933 = vand.u32 %v1638, 2147483648
        %v1934 = vor.u32 1.1754944e-38, %v1933
        %v1935 = vsel %vm1932, %v1934, %v1930
        %v1936 = vmul.f32 1.0, %v1935
        %v1937 = vrcp.pop %v1639
        %v1938 = vmul.f32 %v1639, %v1937
        %v1939 = vsub.f32 1.0, %v1938
        %v1940 = vmul.f32 %v1937, %v1939
        %v1941 = vadd.f32 %v1937, %v1940
        %vm1942 = vweird.f32 %v1639
        %vm1943 = vweird.f32 %v1937
        %vm1944 = vmor %vm1942, %vm1943
        %v1945 = vsel %vm1944, %v1937, %v1941
        %v1946 = vand.u32 2147483647, %v1639
        %vm1947 = vcmp.eq.f32.partialorder %v1946, 8.507059e+37
        %v1948 = vand.u32 %v1639, 2147483648
        %v1949 = vor.u32 1.1754944e-38, %v1948
        %v1950 = vsel %vm1947, %v1949, %v1945
        %v1951 = vmul.f32 1.0, %v1950
        %v1952 = vrcp.pop %v1640
        %v1953 = vmul.f32 %v1640, %v1952
        %v1954 = vsub.f32 1.0, %v1953
        %v1955 = vmul.f32 %v1952, %v1954
        %v1956 = vadd.f32 %v1952, %v1955
        %vm1957 = vweird.f32 %v1640
        %vm1958 = vweird.f32 %v1952
        %vm1959 = vmor %vm1957, %vm1958
        %v1960 = vsel %vm1959, %v1952, %v1956
        %v1961 = vand.u32 2147483647, %v1640
        %vm1962 = vcmp.eq.f32.partialorder %v1961, 8.507059e+37
        %v1963 = vand.u32 %v1640, 2147483648
        %v1964 = vor.u32 1.1754944e-38, %v1963
        %v1965 = vsel %vm1962, %v1964, %v1960
        %v1966 = vmul.f32 1.0, %v1965
        %v1967 = vrcp.pop %v1641
        %v1968 = vmul.f32 %v1641, %v1967
        %v1969 = vsub.f32 1.0, %v1968
        %v1970 = vmul.f32 %v1967, %v1969
        %v1971 = vadd.f32 %v1967, %v1970
        %vm1972 = vweird.f32 %v1641
        %vm1973 = vweird.f32 %v1967
        %vm1974 = vmor %vm1972, %vm1973
        %v1975 = vsel %vm1974, %v1967, %v1971
        %v1976 = vand.u32 2147483647, %v1641
        %vm1977 = vcmp.eq.f32.partialorder %v1976, 8.507059e+37
        %v1978 = vand.u32 %v1641, 2147483648
        %v1979 = vor.u32 1.1754944e-38, %v1978
        %v1980 = vsel %vm1977, %v1979, %v1975
        %v1981 = vmul.f32 1.0, %v1980
        %v1982 = vrcp.pop %v1642
        %v1983 = vmul.f32 %v1642, %v1982
        %v1984 = vsub.f32 1.0, %v1983
        %v1985 = vmul.f32 %v1982, %v1984
        %v1986 = vadd.f32 %v1982, %v1985
        %vm1987 = vweird.f32 %v1642
        %vm1988 = vweird.f32 %v1982
        %vm1989 = vmor %vm1987, %vm1988
        %v1990 = vsel %vm1989, %v1982, %v1986
        %v1991 = vand.u32 2147483647, %v1642
        %vm1992 = vcmp.eq.f32.partialorder %v1991, 8.507059e+37
        %v1993 = vand.u32 %v1642, 2147483648
        %v1994 = vor.u32 1.1754944e-38, %v1993
        %v1995 = vsel %vm1992, %v1994, %v1990
        %v1996 = vmul.f32 1.0, %v1995
        %v1997 = vrcp.pop %v1643
        %v1998 = vmul.f32 %v1643, %v1997
        %v1999 = vsub.f32 1.0, %v1998
        %v2000 = vmul.f32 %v1997, %v1999
        %v2001 = vadd.f32 %v1997, %v2000
        %vm2002 = vweird.f32 %v1643
        %vm2003 = vweird.f32 %v1997
        %vm2004 = vmor %vm2002, %vm2003
        %v2005 = vsel %vm2004, %v1997, %v2001
        %v2006 = vand.u32 2147483647, %v1643
        %vm2007 = vcmp.eq.f32.partialorder %v2006, 8.507059e+37
        %v2008 = vand.u32 %v1643, 2147483648
        %v2009 = vor.u32 1.1754944e-38, %v2008
        %v2010 = vsel %vm2007, %v2009, %v2005
        %v2011 = vmul.f32 1.0, %v2010
        %v2012 = vrcp.pop %v1644
        %v2013 = vmul.f32 %v1644, %v2012
        %v2014 = vsub.f32 1.0, %v2013
        %v2015 = vmul.f32 %v2012, %v2014
        %v2016 = vadd.f32 %v2012, %v2015
        %vm2017 = vweird.f32 %v1644
        %vm2018 = vweird.f32 %v2012
        %vm2019 = vmor %vm2017, %vm2018
        %v2020 = vsel %vm2019, %v2012, %v2016
        %v2021 = vand.u32 2147483647, %v1644
        %vm2022 = vcmp.eq.f32.partialorder %v2021, 8.507059e+37
        %v2023 = vand.u32 %v1644, 2147483648
        %v2024 = vor.u32 1.1754944e-38, %v2023
        %v2025 = vsel %vm2022, %v2024, %v2020
        %v2026 = vmul.f32 1.0, %v2025
        %v2027 = vrcp.pop %v1645
        %v2028 = vmul.f32 %v1645, %v2027
        %v2029 = vsub.f32 1.0, %v2028
        %v2030 = vmul.f32 %v2027, %v2029
        %v2031 = vadd.f32 %v2027, %v2030
        %vm2032 = vweird.f32 %v1645
        %vm2033 = vweird.f32 %v2027
        %vm2034 = vmor %vm2032, %vm2033
        %v2035 = vsel %vm2034, %v2027, %v2031
        %v2036 = vand.u32 2147483647, %v1645
        %vm2037 = vcmp.eq.f32.partialorder %v2036, 8.507059e+37
        %v2038 = vand.u32 %v1645, 2147483648
        %v2039 = vor.u32 1.1754944e-38, %v2038
        %v2040 = vsel %vm2037, %v2039, %v2035
        %v2041 = vmul.f32 1.0, %v2040
        %v2042 = vrcp.pop %v1646
        %v2043 = vmul.f32 %v1646, %v2042
        %v2044 = vsub.f32 1.0, %v2043
        %v2045 = vmul.f32 %v2042, %v2044
        %v2046 = vadd.f32 %v2042, %v2045
        %vm2047 = vweird.f32 %v1646
        %vm2048 = vweird.f32 %v2042
        %vm2049 = vmor %vm2047, %vm2048
        %v2050 = vsel %vm2049, %v2042, %v2046
        %v2051 = vand.u32 2147483647, %v1646
        %vm2052 = vcmp.eq.f32.partialorder %v2051, 8.507059e+37
        %v2053 = vand.u32 %v1646, 2147483648
        %v2054 = vor.u32 1.1754944e-38, %v2053
        %v2055 = vsel %vm2052, %v2054, %v2050
        %v2056 = vmul.f32 1.0, %v2055
        %v2057 = vrcp.pop %v1647
        %v2058 = vmul.f32 %v1647, %v2057
        %v2059 = vsub.f32 1.0, %v2058
        %v2060 = vmul.f32 %v2057, %v2059
        %v2061 = vadd.f32 %v2057, %v2060
        %vm2062 = vweird.f32 %v1647
        %vm2063 = vweird.f32 %v2057
        %vm2064 = vmor %vm2062, %vm2063
        %v2065 = vsel %vm2064, %v2057, %v2061
        %v2066 = vand.u32 2147483647, %v1647
        %vm2067 = vcmp.eq.f32.partialorder %v2066, 8.507059e+37
        %v2068 = vand.u32 %v1647, 2147483648
        %v2069 = vor.u32 1.1754944e-38, %v2068
        %v2070 = vsel %vm2067, %v2069, %v2065
        %v2071 = vmul.f32 1.0, %v2070
        %v2072 = vrcp.pop %v1648
        %v2073 = vmul.f32 %v1648, %v2072
        %v2074 = vsub.f32 1.0, %v2073
        %v2075 = vmul.f32 %v2072, %v2074
        %v2076 = vadd.f32 %v2072, %v2075
        %vm2077 = vweird.f32 %v1648
        %vm2078 = vweird.f32 %v2072
        %vm2079 = vmor %vm2077, %vm2078
        %v2080 = vsel %vm2079, %v2072, %v2076
        %v2081 = vand.u32 2147483647, %v1648
        %vm2082 = vcmp.eq.f32.partialorder %v2081, 8.507059e+37
        %v2083 = vand.u32 %v1648, 2147483648
        %v2084 = vor.u32 1.1754944e-38, %v2083
        %v2085 = vsel %vm2082, %v2084, %v2080
        %v2086 = vmul.f32 1.0, %v2085
        %v2087 = vrcp.pop %v1649
        %v2088 = vmul.f32 %v1649, %v2087
        %v2089 = vsub.f32 1.0, %v2088
        %v2090 = vmul.f32 %v2087, %v2089
        %v2091 = vadd.f32 %v2087, %v2090
        %vm2092 = vweird.f32 %v1649
        %vm2093 = vweird.f32 %v2087
        %vm2094 = vmor %vm2092, %vm2093
        %v2095 = vsel %vm2094, %v2087, %v2091
        %v2096 = vand.u32 2147483647, %v1649
        %vm2097 = vcmp.eq.f32.partialorder %v2096, 8.507059e+37
        %v2098 = vand.u32 %v1649, 2147483648
        %v2099 = vor.u32 1.1754944e-38, %v2098
        %v2100 = vsel %vm2097, %v2099, %v2095
        %v2101 = vmul.f32 1.0, %v2100
        %v2102 = vrcp.pop %v1650
        %v2103 = vmul.f32 %v1650, %v2102
        %v2104 = vsub.f32 1.0, %v2103
        %v2105 = vmul.f32 %v2102, %v2104
        %v2106 = vadd.f32 %v2102, %v2105
        %vm2107 = vweird.f32 %v1650
        %vm2108 = vweird.f32 %v2102
        %vm2109 = vmor %vm2107, %vm2108
        %v2110 = vsel %vm2109, %v2102, %v2106
        %v2111 = vand.u32 2147483647, %v1650
        %vm2112 = vcmp.eq.f32.partialorder %v2111, 8.507059e+37
        %v2113 = vand.u32 %v1650, 2147483648
        %v2114 = vor.u32 1.1754944e-38, %v2113
        %v2115 = vsel %vm2112, %v2114, %v2110
        %v2116 = vmul.f32 1.0, %v2115
        %v2117 = vrcp.pop %v1651
        %v2118 = vmul.f32 %v1651, %v2117
        %v2119 = vsub.f32 1.0, %v2118
        %v2120 = vmul.f32 %v2117, %v2119
        %v2121 = vadd.f32 %v2117, %v2120
        %vm2122 = vweird.f32 %v1651
        %vm2123 = vweird.f32 %v2117
        %vm2124 = vmor %vm2122, %vm2123
        %v2125 = vsel %vm2124, %v2117, %v2121
        %v2126 = vand.u32 2147483647, %v1651
        %vm2127 = vcmp.eq.f32.partialorder %v2126, 8.507059e+37
        %v2128 = vand.u32 %v1651, 2147483648
        %v2129 = vor.u32 1.1754944e-38, %v2128
        %v2130 = vsel %vm2127, %v2129, %v2125
        %v2131 = vmul.f32 1.0, %v2130
        %2132 = vst [vmem:[%s465] sm:$0xff] %v1666
        %2133 = vst [vmem:[%s465 + $0x8] sm:$0xff] %v1681
        %2134 = vst [vmem:[%s465 + $0x10] sm:$0xff] %v1696
        %2135 = vst [vmem:[%s465 + $0x18] sm:$0xff] %v1711
        %2136 = vst [vmem:[%s465 + $0x20] sm:$0xff] %v1726
        %2137 = vst [vmem:[%s465 + $0x28] sm:$0xff] %v1741
        %2138 = vst [vmem:[%s465 + $0x30] sm:$0xff] %v1756
        %2139 = vst [vmem:[%s465 + $0x38] sm:$0xff] %v1771
        %2140 = vst [vmem:[%s465 + $0x40] sm:$0xff] %v1786
        %2141 = vst [vmem:[%s465 + $0x48] sm:$0xff] %v1801
        %2142 = vst [vmem:[%s465 + $0x50] sm:$0xff] %v1816
        %2143 = vst [vmem:[%s465 + $0x58] sm:$0xff] %v1831
        %2144 = vst [vmem:[%s465 + $0x60] sm:$0xff] %v1846
        %2145 = vst [vmem:[%s465 + $0x68] sm:$0xff] %v1861
        %2146 = vst [vmem:[%s465 + $0x70] sm:$0xff] %v1876
        %2147 = vst [vmem:[%s465 + $0x78] sm:$0xff] %v1891
        %2148 = vst [vmem:[%s465 + $0x80] sm:$0xff] %v1906
        %2149 = vst [vmem:[%s465 + $0x88] sm:$0xff] %v1921
        %2150 = vst [vmem:[%s465 + $0x90] sm:$0xff] %v1936
        %2151 = vst [vmem:[%s465 + $0x98] sm:$0xff] %v1951
        %2152 = vst [vmem:[%s465 + $0xa0] sm:$0xff] %v1966
        %2153 = vst [vmem:[%s465 + $0xa8] sm:$0xff] %v1981
        %2154 = vst [vmem:[%s465 + $0xb0] sm:$0xff] %v1996
        %2155 = vst [vmem:[%s465 + $0xb8] sm:$0xff] %v2011
        %2156 = vst [vmem:[%s465 + $0xc0] sm:$0xff] %v2026
        %2157 = vst [vmem:[%s465 + $0xc8] sm:$0xff] %v2041
        %2158 = vst [vmem:[%s465 + $0xd0] sm:$0xff] %v2056
        %2159 = vst [vmem:[%s465 + $0xd8] sm:$0xff] %v2071
        %2160 = vst [vmem:[%s465 + $0xe0] sm:$0xff] %v2086
        %2161 = vst [vmem:[%s465 + $0xe8] sm:$0xff] %v2101
        %2162 = vst [vmem:[%s465 + $0xf0] sm:$0xff] %v2116
        %2163 = vst [vmem:[%s465 + $0xf8] sm:$0xff] %v2131
        %s2164 = sand.u32 %s236, 1
        %s2165 = scalar_lea.sflag [#allocation4], %s2164
        %s2166 = sand.u32 %s236, 1
        %s2167 = smul.addr %s2166, 256
        %s2168 = scalar_lea.vmem [#allocation13], %s2167
        %s2169 = sand.u32 %s262, 1
        %s2170 = scalar_lea.sflag [#allocation15], %s2169
        %s2171 = sand.u32 %s262, 1
        %s2172 = smul.addr %s2171, 8
        %s2173 = scalar_lea.vmem [#allocation14], %s2172
        // Predicated region
        $region81: #{tpu_custom_call.1} parent=55 // pred_check
          %p2174 = pneg %p246
        $region82: #{tpu_custom_call.1} parent=55 // pred_check_branch
          %2176 = sbr.rel (%p2174) target = $region84
        $region83: #{tpu_custom_call.1} parent=55 // pred_region
          %s2177 = smul.u32 16, %s34
          %2179 = vsyncadd %s2165, 0
          %s2180 = smul.addr %s2177, 2
          %s2181 = smul.addr %s2180, 8
          %s2182 = scalar_lea.hbm %s9, %s2181
          %s2183 = sshll.u32 %s2168, 4
          %s2184 = int_to_ptr.vmem [resolvable:$true] %s2183
          %s2185 = sshll.u32 %s2182, 4
          %s2186 = int_to_ptr.hbm [resolvable:$true] %s2185
          %2191 = dma.vmem_to_hbm [thread:$0]  %s2184, 4096, %s2186, %s2165, 256, 256, 16
        $region84: #{tpu_custom_call.1} parent=55 // pred_fallthru
          _
        // Predicated region
        $region85: #{tpu_custom_call.1} parent=55 // pred_check
          %p2192 = pneg %p272
        $region86: #{tpu_custom_call.1} parent=55 // pred_check_branch
          %2194 = sbr.rel (%p2192) target = $region88
        $region87: #{tpu_custom_call.1} parent=55 // pred_region
          %2196 = vsyncadd %s2170, 0
          %s2197 = smul.addr %s34, 8
          %s2198 = scalar_lea.hbm %s10, %s2197
          %s2200 = sshll.u32 %s2173, 4
          %s2201 = int_to_ptr.vmem [resolvable:$true] %s2200
          %s2202 = sshll.u32 %s2198, 4
          %s2203 = int_to_ptr.hbm [resolvable:$true] %s2202
          %2205 = dma.vmem_to_hbm [thread:$0]  %s2201, 128, %s2203, %s2170
        $region88: #{tpu_custom_call.1} parent=55 // pred_fallthru
          _
      $region56: #{tpu_custom_call.1} parent=5 // pred_fallthru
        _
      %p2206 = scmp.le.s32.totalorder 2, %s29
      // Predicated region
      $region89: #{tpu_custom_call.1} parent=5 // pred_check
        %p2207 = pneg %p2206
      $region90: #{tpu_custom_call.1} parent=5 // pred_check_branch
        %2209 = sbr.rel (%p2207) target = $region92
      $region91: #{tpu_custom_call.1} parent=5 // pred_region
        %s2210 = ssub.s32 %s29, 2
        // Predicated region
        $region93: #{tpu_custom_call.1} parent=91 // pred_check
          %p2211 = pneg %p252
        $region94: #{tpu_custom_call.1} parent=91 // pred_check_branch
          %2213 = sbr.rel (%p2211) target = $region96
        $region95: #{tpu_custom_call.1} parent=91 // pred_region
          %s2214 = sand.u32 %s237, 1
          %s2215 = scalar_lea.sflag [#allocation4], %s2214
          %s2216 = sand.u32 %s237, 1
          %s2217 = smul.addr %s2216, 256
          %s2218 = scalar_lea.vmem [#allocation13], %s2217
          %2220 = dma.done %s2215, 4096
        $region96: #{tpu_custom_call.1} parent=91 // pred_fallthru
          _
        // Predicated region
        $region97: #{tpu_custom_call.1} parent=91 // pred_check
          %p2221 = pneg %p278
        $region98: #{tpu_custom_call.1} parent=91 // pred_check_branch
          %2223 = sbr.rel (%p2221) target = $region100
        $region99: #{tpu_custom_call.1} parent=91 // pred_region
          %s2224 = sand.u32 %s263, 1
          %s2225 = scalar_lea.sflag [#allocation15], %s2224
          %s2226 = sand.u32 %s263, 1
          %s2227 = smul.addr %s2226, 8
          %s2228 = scalar_lea.vmem [#allocation14], %s2227
          %2230 = dma.done %s2225, 128
        $region100: #{tpu_custom_call.1} parent=91 // pred_fallthru
          _
      $region92: #{tpu_custom_call.1} parent=5 // pred_fallthru
        _
    $region6: #{tpu_custom_call.1} parent=1 // loop_footer
      %s33 = sadd.s32 1, %s29
    $region7: #{tpu_custom_call.1} parent=1 // loop_footer_branch
      %28 = sbr.rel target = $region3
    $region8: #{tpu_custom_call.1} parent=1 // loop_exit
      _
    %2231 = vsyncpa [#allocation3], 1
    %s2232 = scalar_lea.sflag [#allocation3], 1
    %2233 = vsyncpa %s2232, 1
    %2234 = vsyncpa [#allocation6], 1
    %2235 = vsyncpa [#allocation9], 1
    %2236 = vsyncpa [#allocation12], 1
    %2237 = vsyncpa [#allocation4], 1
    %s2238 = scalar_lea.sflag [#allocation4], 1
    %2239 = vsyncpa %s2238, 1
    %2240 = vsyncpa [#allocation15], 1
    %s2241 = scalar_lea.sflag [#allocation15], 1
    %2242 = vsyncpa %s2241, 1

</llo_original>
